<compile_context>
chip_gen: v7x
topology: tpu7x:2x2x1
jax: 0.10.0
libtpu: 0.0.40
codegen_flags: <defaults>
</compile_context>

<pallas_src>
import functools

import jax
import jax.numpy as jnp
from jax.experimental import pallas as pl
from jax.experimental.pallas import tpu as pltpu

_BN_EPS = 1e-4           # matches get_norm_layer(..., eps=0.0001)
_LANE = 128
_VMEM_LIMIT = 32 * 1024 * 1024


# -----------------------------------------------------------------------------
# helpers
# -----------------------------------------------------------------------------


def _round_up(x, m):
    return ((x + m - 1) // m) * m


def _choose_tm(mp):
    """Largest lane tile (<=2048) that still leaves >=2 grid programs (so both
    v7x TensorCores get work); falls back to one full-width program."""
    for tm in (2048, 1024, 512, 256, 128):
        if mp % tm == 0 and mp // tm >= 2:
            return tm
    return mp


def _compiler_params():
    return pltpu.CompilerParams(
        dimension_semantics=("parallel",),
        vmem_limit_bytes=_VMEM_LIMIT,
    )


def _pad_lanes(x, mp):
    m = x.shape[-1]
    if mp == m:
        return x
    return jnp.pad(x, ((0, 0), (0, mp - m)))


# -----------------------------------------------------------------------------
# Pallas kernels
# -----------------------------------------------------------------------------


def _bn_elu_kernel(x_ref, s_ref, t_ref, o_ref):
    # eval-BatchNorm affine + ELU(alpha=1); [C, TM] lane-dense; bf16 producer.
    z = x_ref[...] * s_ref[...] + t_ref[...]
    y = jnp.where(z > 0, z, jnp.exp(jnp.minimum(z, 0.0)) - 1.0)
    o_ref[...] = y.astype(o_ref.dtype)


def _conv1_fused_kernel(p_ref, ws_ref, bs_ref, wa_ref, s2_ref, t2_ref,
                        skip_ref, act_ref):
    # conv1 as matmul over im2col patches, split into two dots so the full
    # [C1, TM] f32 result is never live at once (keeps vreg pressure bounded
    # at large TM).  bf16 MXU operands, f32 accumulate / f32 epilogue.
    p = p_ref[...]
    # skip half: y = Ws @ patches + b   (raw, f32 out)
    ys = jnp.dot(ws_ref[...], p, preferred_element_type=jnp.float32)
    skip_ref[...] = ys + bs_ref[...]
    # bottleneck half: conv bias already folded into the BN2 shift; fused
    # BN2 + ELU epilogue; bf16 producer for conv2.
    ya = jnp.dot(wa_ref[...], p, preferred_element_type=jnp.float32)
    z = ya * s2_ref[...] + t2_ref[...]
    a = jnp.where(z > 0, z, jnp.exp(jnp.minimum(z, 0.0)) - 1.0)
    act_ref[...] = a.astype(act_ref.dtype)


def _conv2_tap_kernel(a_ref, w_ref, b_ref, o_ref, *, k, wpp, lout):
    # Per-tap stride-1 conv (no im2col):
    #   out[co, m] = b[co] + sum_{di,dj} W2[:,:,di,dj] @ a_flat[:, m + di*Wpp + dj]
    # where m = ho*Wpp + wo enumerates the flattened padded spatial grid of one
    # image.  a_ref: [1, cb, Limg_p] bf16 (zero-padded image, flattened and
    # lane-padded), w_ref: [k*k, cout, cb] bf16, b_ref: [cout, 1] f32,
    # o_ref: [1, cout, Lout] f32 (lane-dense; junk columns discarded outside).
    a = a_ref[0]
    acc = jnp.zeros(o_ref.shape[1:], jnp.float32)
    for di in range(k):
        for dj in range(k):
            off = di * wpp + dj
            acc = acc + jnp.dot(w_ref[di * k + dj], a[:, off:off + lout],
                                preferred_element_type=jnp.float32)
    o_ref[0] = acc + b_ref[...]


# -----------------------------------------------------------------------------
# pallas_call wrappers
# -----------------------------------------------------------------------------


def bn_elu_cm(x, scale, shift):
    """x: [C, M] f32; scale/shift: [C]. Returns bf16 ELU(x*scale+shift), [C, M]."""
    C, M = x.shape
    Mp = _round_up(M, _LANE)
    TM = _choose_tm(Mp)
    xp = _pad_lanes(x, Mp)
    out = pl.pallas_call(
        _bn_elu_kernel,
        out_shape=jax.ShapeDtypeStruct((C, Mp), jnp.bfloat16),
        grid=(Mp // TM,),
        in_specs=[
            pl.BlockSpec((C, TM), lambda i: (0, i)),
            pl.BlockSpec((C, 1), lambda i: (0, 0)),
            pl.BlockSpec((C, 1), lambda i: (0, 0)),
        ],
        out_specs=pl.BlockSpec((C, TM), lambda i: (0, i)),
        compiler_params=_compiler_params(),
    )(xp, scale.reshape(C, 1), shift.reshape(C, 1))
    return out[:, :M]


def conv1_fused(patches, w_skip, b_skip, w_act, scale2, shift2):
    """Fused conv1 (matmul on bf16 im2col patches) + bias + channel split +
    BN2 + ELU.  Returns (skip [cout, M] f32, act [cb, M] bf16)."""
    K, M = patches.shape
    cout = w_skip.shape[0]
    cb = w_act.shape[0]
    Mp = _round_up(M, _LANE)
    TM = _choose_tm(Mp)
    patches = _pad_lanes(patches, Mp)

    cost = pl.CostEstimate(
        flops=2 * Mp * K * (cout + cb),
        transcendentals=cb * Mp,
        bytes_accessed=(K * Mp + (cout + cb) * K + cb * Mp) * 2
        + (cout + 2 * cb) * 4 + cout * Mp * 4,
    )
    skip, act = pl.pallas_call(
        _conv1_fused_kernel,
        out_shape=(jax.ShapeDtypeStruct((cout, Mp), jnp.float32),
                   jax.ShapeDtypeStruct((cb, Mp), jnp.bfloat16)),
        grid=(Mp // TM,),
        in_specs=[
            pl.BlockSpec((K, TM), lambda i: (0, i)),
            pl.BlockSpec((cout, K), lambda i: (0, 0)),
            pl.BlockSpec((cout, 1), lambda i: (0, 0)),
            pl.BlockSpec((cb, K), lambda i: (0, 0)),
            pl.BlockSpec((cb, 1), lambda i: (0, 0)),
            pl.BlockSpec((cb, 1), lambda i: (0, 0)),
        ],
        out_specs=(pl.BlockSpec((cout, TM), lambda i: (0, i)),
                   pl.BlockSpec((cb, TM), lambda i: (0, i))),
        compiler_params=_compiler_params(),
        cost_estimate=cost,
    )(patches, w_skip, b_skip.reshape(cout, 1),
      w_act, scale2.reshape(cb, 1), shift2.reshape(cb, 1))
    return skip[:, :M], act[:, :M]


def conv2_pertap(act_nchw, w2, b2, k):
    """conv2 (stride 1, pad k//2) via in-kernel per-tap accumulation.

    act_nchw: [N, cb, Ho, Wo] bf16.  Returns [N, cout, Ho, Wo] f32 (conv+bias,
    residual added by the caller).  No patches array is ever materialized."""
    N, cb, Ho, Wo = act_nchw.shape
    cout = w2.shape[0]
    p = k // 2
    Hpp, Wpp = Ho + 2 * p, Wo + 2 * p
    Limg = Hpp * Wpp
    halo = p * Wpp + p
    Lout = _round_up(Ho * Wpp, _LANE)            # lane-dense output span
    Limg_p = _round_up(2 * halo + Lout, _LANE)   # keeps all tap slices in bounds

    a = jnp.pad(act_nchw, ((0, 0), (0, 0), (p, p), (p, p)))
    a = a.reshape(N, cb, Limg)
    a = jnp.pad(a, ((0, 0), (0, 0), (0, Limg_p - Limg)))

    # [cout, cb, k, k] -> [k*k, cout, cb]: one small weight matrix per tap.
    wk = jnp.transpose(w2, (2, 3, 0, 1)).reshape(k * k, cout, cb)
    wk = wk.astype(jnp.bfloat16)

    kernel = functools.partial(_conv2_tap_kernel, k=k, wpp=Wpp, lout=Lout)
    cost = pl.CostEstimate(
        flops=2 * N * k * k * cout * cb * Lout,
        transcendentals=0,
        bytes_accessed=N * (cb * Limg_p * 2 + cout * Lout * 4)
        + k * k * cout * cb * 2 + cout * 4,
    )
    out = pl.pallas_call(
        kernel,
        out_shape=jax.ShapeDtypeStruct((N, cout, Lout), jnp.float32),
        grid=(N,),
        in_specs=[
            pl.BlockSpec((1, cb, Limg_p), lambda n: (n, 0, 0)),
            pl.BlockSpec((k * k, cout, cb), lambda n: (0, 0, 0)),
            pl.BlockSpec((cout, 1), lambda n: (0, 0)),
        ],
        out_specs=pl.BlockSpec((1, cout, Lout), lambda n: (n, 0, 0)),
        compiler_params=_compiler_params(),
        cost_estimate=cost,
    )(a, wk, b2.reshape(cout, 1))
    # valid interior: flat index ho*Wpp + wo with wo < Wo (rest is junk).
    out = out[:, :, :Ho * Wpp].reshape(N, cout, Ho, Wpp)[:, :, :, :Wo]
    return out


# -----------------------------------------------------------------------------
# XLA glue: channels-first im2col (conv1 only), BN affine folding
# -----------------------------------------------------------------------------


def im2col_cf(a, ksize, stride, pad):
    """a: [C, N, H, W] -> patches [ksize*ksize*C, N*Ho*Wo] (tap-major rows)."""
    C, N, H, W = a.shape
    ap = jnp.pad(a, ((0, 0), (0, 0), (pad, pad), (pad, pad)))
    Ho = (H + 2 * pad - ksize) // stride + 1
    Wo = (W + 2 * pad - ksize) // stride + 1
    taps = []
    for i in range(ksize):
        for j in range(ksize):
            taps.append(ap[:, :, i:i + stride * Ho:stride,
                           j:j + stride * Wo:stride])
    pt = jnp.concatenate(taps, axis=0)  # [k*k*C, N, Ho, Wo]
    return pt.reshape(ksize * ksize * C, N * Ho * Wo), Ho, Wo


def w_to_mat(w):
    """PyTorch conv weight [Cout, Cin, KH, KW] -> [Cout, KH*KW*Cin] matching the
    tap-major patch row order of im2col_cf."""
    Cout, Cin, KH, KW = w.shape
    return jnp.transpose(w, (0, 2, 3, 1)).reshape(Cout, KH * KW * Cin)


def bn_affine(bn):
    gamma, beta, rm, rv = bn
    scale = gamma * jax.lax.rsqrt(rv + _BN_EPS)
    shift = beta - rm * scale
    return scale, shift


# -----------------------------------------------------------------------------
# ResDown forward (Pallas path)
# -----------------------------------------------------------------------------


def resdown_forward(p, x_nchw):
    x = x_nchw.astype(jnp.float32)
    N, Cin, H, W = x.shape
    cout = p["channel_out"]
    cb = cout // 2
    k = p["ksize"]
    assert Cin % 8 == 0 and cout % 8 == 0 and cb % 8 == 0, \
        "channel counts must be sublane-aligned (multiples of 8)"

    # channels-first [C, N*H*W]; pixel axis on the TPU lanes (lane-dense).
    x_cm = jnp.transpose(x, (1, 0, 2, 3)).reshape(Cin, N * H * W)

    # BN1 + ELU (standalone: conv zero-padding must happen after the activation).
    # Emits bf16 so the downstream im2col moves half the bytes and the MXU
    # operand needs no separate cast pass.
    s1, t1 = bn_affine(p["norm1"])
    a1 = bn_elu_cm(x_cm, s1, t1).reshape(Cin, N, H, W)

    # conv1 (stride 2, pad k//2) as an MXU matmul over bf16 im2col patches,
    # fused with the channel split and the BN2 + ELU epilogue (conv1 bias of
    # the bottleneck half folded into the BN2 shift).
    patches1, Ho, Wo = im2col_cf(a1, k, stride=2, pad=k // 2)
    w1m = w_to_mat(p["conv1"]["w"]).astype(jnp.bfloat16)
    b1 = p["conv1"]["b"]
    s2, t2 = bn_affine(p["norm2"])
    t2_fold = t2 + s2 * b1[cout:]
    skip, act = conv1_fused(patches1, w1m[:cout], b1[:cout],
                            w1m[cout:], s2, t2_fold)

    # conv2 (stride 1, pad k//2): in-kernel per-tap accumulation over the
    # padded bottleneck activation (no patches2 materialization).
    act_nchw = act.reshape(cb, N, Ho, Wo).transpose(1, 0, 2, 3)
    y = conv2_pertap(act_nchw, p["conv2"]["w"], p["conv2"]["b"], k)

    # residual add + NCHW formatting: a single XLA-fused elementwise pass
    # (skip never re-enters a pallas_call, so no slice -> re-pad round trip).
    skip_nchw = skip.reshape(cout, N, Ho, Wo).transpose(1, 0, 2, 3)
    return y + skip_nchw


# -----------------------------------------------------------------------------
# Parameter construction + pure-JAX reference (for the correctness check)
# -----------------------------------------------------------------------------


def init_conv(key, cout, cin, k):
    k1, k2 = jax.random.split(key)
    bound = 1.0 / float(cin * k * k) ** 0.5
    w = jax.random.uniform(k1, (cout, cin, k, k), jnp.float32, -bound, bound)
    b = jax.random.uniform(k2, (cout,), jnp.float32, -bound, bound)
    return {"w": w, "b": b}


def init_bn(key, c):
    kg, kb, km, kv = jax.random.split(key, 4)
    gamma = 1.0 + 0.1 * jax.random.normal(kg, (c,), jnp.float32)
    beta = 0.1 * jax.random.normal(kb, (c,), jnp.float32)
    rmean = 0.1 * jax.random.normal(km, (c,), jnp.float32)
    rvar = 1.0 + 0.1 * jax.random.uniform(kv, (c,), jnp.float32)
    return (gamma, beta, rmean, rvar)


def init_resdown(key, cin, cout, k=3):
    k1, k2, k3, k4 = jax.random.split(key, 4)
    return {
        "norm1": init_bn(k1, cin),
        "conv1": init_conv(k2, cout // 2 + cout, cin, k),
        "norm2": init_bn(k3, cout // 2),
        "conv2": init_conv(k4, cout, cout // 2, k),
        "channel_out": cout,
        "ksize": k,
    }


def resdown_reference(p, x):
    """Plain-JAX f32 reference (lax.conv) mirroring the PyTorch forward."""
    def bn(v, bn_p):
        g, b, rm, rv = bn_p
        s = g / jnp.sqrt(rv + _BN_EPS)
        return (v - rm[None, :, None, None]) * s[None, :, None, None] \
            + b[None, :, None, None]

    def elu(v):
        return jnp.where(v > 0, v, jnp.exp(jnp.minimum(v, 0.0)) - 1.0)

    def conv(v, w, b, stride):
        pad = w.shape[-1] // 2
        y = jax.lax.conv_general_dilated(
            v, w, window_strides=(stride, stride),
            padding=((pad, pad), (pad, pad)),
            dimension_numbers=("NCHW", "OIHW", "NCHW"))
        return y + b[None, :, None, None]

    cout = p["channel_out"]
    a = elu(bn(x, p["norm1"]))
    x_cat = conv(a, p["conv1"]["w"], p["conv1"]["b"], 2)
    skip = x_cat[:, :cout]
    z = elu(bn(x_cat[:, cout:], p["norm2"]))
    y = conv(z, p["conv2"]["w"], p["conv2"]["b"], 1)
    return y + skip


# -----------------------------------------------------------------------------
# main
# -----------------------------------------------------------------------------

if __name__ == "__main__":
    key = jax.random.PRNGKey(0)
    k_param, k_x = jax.random.split(key)

    channel_in, channel_out = 16, 32
    params = init_resdown(k_param, channel_in, channel_out, k=3)

    x = jax.random.normal(k_x, (2, channel_in, 16, 16), jnp.float32)  # NCHW

    fwd = jax.jit(functools.partial(resdown_forward, params))
    out = fwd(x)
    jax.block_until_ready(out)

    ref = resdown_reference(params, x)
    assert out.shape == (2, channel_out, 8, 8)
    assert bool(jnp.all(jnp.isfinite(out)))
    max_err = float(jnp.max(jnp.abs(out - ref)))
    # bf16 MXU operands vs f32 reference -> loose-but-meaningful tolerance.
    assert max_err < 1e-1, f"max abs error vs reference: {max_err}"
    print("KERNEL_OK")
</pallas_src>

<mosaic_0001>
module attributes {stable_mosaic.version = 11 : i64} {
  func.func @_bn_elu_kernel(%arg0: i32, %arg1: memref<16x256xf32, #tpu.memory_space<vmem>>, %arg2: memref<16x1xf32, #tpu.memory_space<vmem>>, %arg3: memref<16x1xf32, #tpu.memory_space<vmem>>, %arg4: memref<16x256xbf16, #tpu.memory_space<vmem>>) attributes {dimension_semantics = [#tpu.dimension_semantics<parallel>], iteration_bounds = array<i64: 2>, scalar_prefetch = 0 : i64, scratch_operands = 0 : i64, tpu.core_type = #tpu.core_type<tc>, window_params = [{transform_indices = @transform_0, window_bounds = array<i64: 16, 256>}, {pipeline_mode = #tpu.pipeline_mode<synchronous>, transform_indices = @transform_1, window_bounds = array<i64: 16, 1>}, {pipeline_mode = #tpu.pipeline_mode<synchronous>, transform_indices = @transform_2, window_bounds = array<i64: 16, 1>}, {transform_indices = @transform_3, window_bounds = array<i64: 16, 256>}]} {
    %c0 = arith.constant 0 : index
    %c0_0 = arith.constant 0 : index
    %0 = vector.load %arg1[%c0, %c0_0] : memref<16x256xf32, #tpu.memory_space<vmem>>, vector<16x256xf32>
    %c0_1 = arith.constant 0 : index
    %c0_2 = arith.constant 0 : index
    %1 = vector.load %arg2[%c0_1, %c0_2] : memref<16x1xf32, #tpu.memory_space<vmem>>, vector<16x1xf32>
    %2 = vector.broadcast %1 : vector<16x1xf32> to vector<16x256xf32>
    %3 = arith.mulf %0, %2 : vector<16x256xf32>
    %c0_3 = arith.constant 0 : index
    %c0_4 = arith.constant 0 : index
    %4 = vector.load %arg3[%c0_3, %c0_4] : memref<16x1xf32, #tpu.memory_space<vmem>>, vector<16x1xf32>
    %5 = vector.broadcast %4 : vector<16x1xf32> to vector<16x256xf32>
    %6 = arith.addf %3, %5 : vector<16x256xf32>
    %cst = arith.constant 0.000000e+00 : f32
    %7 = vector.broadcast %cst : f32 to vector<16x256xf32>
    %8 = arith.cmpf ogt, %6, %7 : vector<16x256xf32>
    %cst_5 = arith.constant 0.000000e+00 : f32
    %9 = vector.broadcast %cst_5 : f32 to vector<16x256xf32>
    %10 = arith.minimumf %6, %9 : vector<16x256xf32>
    %11 = math.exp %10 : vector<16x256xf32>
    %cst_6 = arith.constant 1.000000e+00 : f32
    %12 = vector.broadcast %cst_6 : f32 to vector<16x256xf32>
    %13 = arith.subf %11, %12 : vector<16x256xf32>
    %14 = arith.select %8, %6, %13 : vector<16x256xi1>, vector<16x256xf32>
    %15 = arith.truncf %14 : vector<16x256xf32> to vector<16x256xbf16>
    %c0_7 = arith.constant 0 : index
    %c0_8 = arith.constant 0 : index
    %16 = vector.load %arg4[%c0_7, %c0_8] : memref<16x256xbf16, #tpu.memory_space<vmem>>, vector<16x256xbf16>
    tpu.vector_store %arg4[%c0_7, %c0_8], %15 {strides = array<i32>} : memref<16x256xbf16, #tpu.memory_space<vmem>>, vector<16x256xbf16>,
    return
  }
  func.func @transform_0(%arg0: i32) -> (i32, i32) {
    %c0_i32 = arith.constant 0 : i32
    %c0_i32_0 = arith.constant 0 : i32
    return %c0_i32, %arg0 : i32, i32
  }
  func.func @transform_1(%arg0: i32) -> (i32, i32) {
    %c0_i32 = arith.constant 0 : i32
    %c0_i32_0 = arith.constant 0 : i32
    %c0_i32_1 = arith.constant 0 : i32
    return %c0_i32, %c0_i32_0 : i32, i32
  }
  func.func @transform_2(%arg0: i32) -> (i32, i32) {
    %c0_i32 = arith.constant 0 : i32
    %c0_i32_0 = arith.constant 0 : i32
    %c0_i32_1 = arith.constant 0 : i32
    return %c0_i32, %c0_i32_0 : i32, i32
  }
  func.func @transform_3(%arg0: i32) -> (i32, i32) {
    %c0_i32 = arith.constant 0 : i32
    %c0_i32_0 = arith.constant 0 : i32
    return %c0_i32, %arg0 : i32, i32
  }
}

module attributes {stable_mosaic.version = 11 : i64} {
  func.func @_conv1_fused_kernel(%arg0: i32, %arg1: memref<144x128xbf16, #tpu.memory_space<vmem>>, %arg2: memref<32x144xbf16, #tpu.memory_space<vmem>>, %arg3: memref<32x1xf32, #tpu.memory_space<vmem>>, %arg4: memref<16x144xbf16, #tpu.memory_space<vmem>>, %arg5: memref<16x1xf32, #tpu.memory_space<vmem>>, %arg6: memref<16x1xf32, #tpu.memory_space<vmem>>, %arg7: memref<32x128xf32, #tpu.memory_space<vmem>>, %arg8: memref<16x128xbf16, #tpu.memory_space<vmem>>) attributes {dimension_semantics = [#tpu.dimension_semantics<parallel>], iteration_bounds = array<i64: 1>, scalar_prefetch = 0 : i64, scratch_operands = 0 : i64, tpu.core_type = #tpu.core_type<tc>, window_params = [{transform_indices = @transform_0, window_bounds = array<i64: 144, 128>}, {pipeline_mode = #tpu.pipeline_mode<synchronous>, transform_indices = @transform_1, window_bounds = array<i64: 32, 144>}, {pipeline_mode = #tpu.pipeline_mode<synchronous>, transform_indices = @transform_2, window_bounds = array<i64: 32, 1>}, {pipeline_mode = #tpu.pipeline_mode<synchronous>, transform_indices = @transform_3, window_bounds = array<i64: 16, 144>}, {pipeline_mode = #tpu.pipeline_mode<synchronous>, transform_indices = @transform_4, window_bounds = array<i64: 16, 1>}, {pipeline_mode = #tpu.pipeline_mode<synchronous>, transform_indices = @transform_5, window_bounds = array<i64: 16, 1>}, {transform_indices = @transform_6, window_bounds = array<i64: 32, 128>}, {transform_indices = @transform_7, window_bounds = array<i64: 16, 128>}]} {
    %c0 = arith.constant 0 : index
    %c0_0 = arith.constant 0 : index
    %0 = vector.load %arg1[%c0, %c0_0] : memref<144x128xbf16, #tpu.memory_space<vmem>>, vector<144x128xbf16>
    %c0_1 = arith.constant 0 : index
    %c0_2 = arith.constant 0 : index
    %1 = vector.load %arg2[%c0_1, %c0_2] : memref<32x144xbf16, #tpu.memory_space<vmem>>, vector<32x144xbf16>
    %cst = arith.constant dense<0.000000e+00> : vector<32x128xf32>
    %2 = tpu.matmul %1, %0, %cst {dimension_numbers = #tpu.dot_dimension_numbers<[1], [0], [0], [1], [0, 0, 1, 1], [], []>} : vector<32x144xbf16>, vector<144x128xbf16>, vector<32x128xf32> -> vector<32x128xf32>
    %c0_3 = arith.constant 0 : index
    %c0_4 = arith.constant 0 : index
    %3 = vector.load %arg3[%c0_3, %c0_4] : memref<32x1xf32, #tpu.memory_space<vmem>>, vector<32x1xf32>
    %4 = vector.broadcast %3 : vector<32x1xf32> to vector<32x128xf32>
    %5 = arith.addf %2, %4 : vector<32x128xf32>
    %c0_5 = arith.constant 0 : index
    %c0_6 = arith.constant 0 : index
    %6 = vector.load %arg7[%c0_5, %c0_6] : memref<32x128xf32, #tpu.memory_space<vmem>>, vector<32x128xf32>
    tpu.vector_store %arg7[%c0_5, %c0_6], %5 {strides = array<i32>} : memref<32x128xf32, #tpu.memory_space<vmem>>, vector<32x128xf32>,
    %c0_7 = arith.constant 0 : index
    %c0_8 = arith.constant 0 : index
    %7 = vector.load %arg4[%c0_7, %c0_8] : memref<16x144xbf16, #tpu.memory_space<vmem>>, vector<16x144xbf16>
    %cst_9 = arith.constant dense<0.000000e+00> : vector<16x128xf32>
    %8 = tpu.matmul %7, %0, %cst_9 {dimension_numbers = #tpu.dot_dimension_numbers<[1], [0], [0], [1], [0, 0, 1, 1], [], []>} : vector<16x144xbf16>, vector<144x128xbf16>, vector<16x128xf32> -> vector<16x128xf32>
    %c0_10 = arith.constant 0 : index
    %c0_11 = arith.constant 0 : index
    %9 = vector.load %arg5[%c0_10, %c0_11] : memref<16x1xf32, #tpu.memory_space<vmem>>, vector<16x1xf32>
    %10 = vector.broadcast %9 : vector<16x1xf32> to vector<16x128xf32>
    %11 = arith.mulf %8, %10 : vector<16x128xf32>
    %c0_12 = arith.constant 0 : index
    %c0_13 = arith.constant 0 : index
    %12 = vector.load %arg6[%c0_12, %c0_13] : memref<16x1xf32, #tpu.memory_space<vmem>>, vector<16x1xf32>
    %13 = vector.broadcast %12 : vector<16x1xf32> to vector<16x128xf32>
    %14 = arith.addf %11, %13 : vector<16x128xf32>
    %cst_14 = arith.constant 0.000000e+00 : f32
    %15 = vector.broadcast %cst_14 : f32 to vector<16x128xf32>
    %16 = arith.cmpf ogt, %14, %15 : vector<16x128xf32>
    %cst_15 = arith.constant 0.000000e+00 : f32
    %17 = vector.broadcast %cst_15 : f32 to vector<16x128xf32>
    %18 = arith.minimumf %14, %17 : vector<16x128xf32>
    %19 = math.exp %18 : vector<16x128xf32>
    %cst_16 = arith.constant 1.000000e+00 : f32
    %20 = vector.broadcast %cst_16 : f32 to vector<16x128xf32>
    %21 = arith.subf %19, %20 : vector<16x128xf32>
    %22 = arith.select %16, %14, %21 : vector<16x128xi1>, vector<16x128xf32>
    %23 = arith.truncf %22 : vector<16x128xf32> to vector<16x128xbf16>
    %c0_17 = arith.constant 0 : index
    %c0_18 = arith.constant 0 : index
    %24 = vector.load %arg8[%c0_17, %c0_18] : memref<16x128xbf16, #tpu.memory_space<vmem>>, vector<16x128xbf16>
    tpu.vector_store %arg8[%c0_17, %c0_18], %23 {strides = array<i32>} : memref<16x128xbf16, #tpu.memory_space<vmem>>, vector<16x128xbf16>,
    return
  }
  func.func @transform_0(%arg0: i32) -> (i32, i32) {
    %c0_i32 = arith.constant 0 : i32
    %c0_i32_0 = arith.constant 0 : i32
    return %c0_i32, %arg0 : i32, i32
  }
  func.func @transform_1(%arg0: i32) -> (i32, i32) {
    %c0_i32 = arith.constant 0 : i32
    %c0_i32_0 = arith.constant 0 : i32
    %c0_i32_1 = arith.constant 0 : i32
    return %c0_i32, %c0_i32_0 : i32, i32
  }
  func.func @transform_2(%arg0: i32) -> (i32, i32) {
    %c0_i32 = arith.constant 0 : i32
    %c0_i32_0 = arith.constant 0 : i32
    %c0_i32_1 = arith.constant 0 : i32
    return %c0_i32, %c0_i32_0 : i32, i32
  }
  func.func @transform_3(%arg0: i32) -> (i32, i32) {
    %c0_i32 = arith.constant 0 : i32
    %c0_i32_0 = arith.constant 0 : i32
    %c0_i32_1 = arith.constant 0 : i32
    return %c0_i32, %c0_i32_0 : i32, i32
  }
  func.func @transform_4(%arg0: i32) -> (i32, i32) {
    %c0_i32 = arith.constant 0 : i32
    %c0_i32_0 = arith.constant 0 : i32
    %c0_i32_1 = arith.constant 0 : i32
    return %c0_i32, %c0_i32_0 : i32, i32
  }
  func.func @transform_5(%arg0: i32) -> (i32, i32) {
    %c0_i32 = arith.constant 0 : i32
    %c0_i32_0 = arith.constant 0 : i32
    %c0_i32_1 = arith.constant 0 : i32
    return %c0_i32, %c0_i32_0 : i32, i32
  }
  func.func @transform_6(%arg0: i32) -> (i32, i32) {
    %c0_i32 = arith.constant 0 : i32
    %c0_i32_0 = arith.constant 0 : i32
    return %c0_i32, %arg0 : i32, i32
  }
  func.func @transform_7(%arg0: i32) -> (i32, i32) {
    %c0_i32 = arith.constant 0 : i32
    %c0_i32_0 = arith.constant 0 : i32
    return %c0_i32, %arg0 : i32, i32
  }
}

module attributes {stable_mosaic.version = 11 : i64} {
  func.func @_conv2_tap_kernel(%arg0: i32, %arg1: memref<1x16x256xbf16, #tpu.memory_space<vmem>>, %arg2: memref<9x32x16xbf16, #tpu.memory_space<vmem>>, %arg3: memref<32x1xf32, #tpu.memory_space<vmem>>, %arg4: memref<1x32x128xf32, #tpu.memory_space<vmem>>) attributes {dimension_semantics = [#tpu.dimension_semantics<parallel>], iteration_bounds = array<i64: 2>, scalar_prefetch = 0 : i64, scratch_operands = 0 : i64, tpu.core_type = #tpu.core_type<tc>, window_params = [{transform_indices = @transform_0, window_bounds = array<i64: 1, 16, 256>}, {pipeline_mode = #tpu.pipeline_mode<synchronous>, transform_indices = @transform_1, window_bounds = array<i64: 9, 32, 16>}, {pipeline_mode = #tpu.pipeline_mode<synchronous>, transform_indices = @transform_2, window_bounds = array<i64: 32, 1>}, {transform_indices = @transform_3, window_bounds = array<i64: 1, 32, 128>}]} {
    %c0 = arith.constant 0 : index
    %c0_0 = arith.constant 0 : index
    %c0_1 = arith.constant 0 : index
    %0 = vector.load %arg1[%c0, %c0_0, %c0_1] : memref<1x16x256xbf16, #tpu.memory_space<vmem>>, vector<1x16x256xbf16>
    %1 = vector.shape_cast %0 : vector<1x16x256xbf16> to vector<16x256xbf16>
    %cst = arith.constant 0.000000e+00 : f32
    %2 = vector.broadcast %cst : f32 to vector<32x128xf32>
    %c0_2 = arith.constant 0 : index
    %c0_3 = arith.constant 0 : index
    %c0_4 = arith.constant 0 : index
    %3 = vector.load %arg2[%c0_2, %c0_3, %c0_4] : memref<9x32x16xbf16, #tpu.memory_space<vmem>>, vector<1x32x16xbf16>
    %4 = vector.shape_cast %3 : vector<1x32x16xbf16> to vector<32x16xbf16>
    %5 = vector.extract_strided_slice %1 {offsets = [0, 0], sizes = [16, 128], strides = [1, 1]} : vector<16x256xbf16> to vector<16x128xbf16>
    %cst_5 = arith.constant dense<0.000000e+00> : vector<32x128xf32>
    %6 = tpu.matmul %4, %5, %cst_5 {dimension_numbers = #tpu.dot_dimension_numbers<[1], [0], [0], [1], [0, 0, 1, 1], [], []>} : vector<32x16xbf16>, vector<16x128xbf16>, vector<32x128xf32> -> vector<32x128xf32>
    %7 = arith.addf %2, %6 : vector<32x128xf32>
    %c1 = arith.constant 1 : index
    %c0_6 = arith.constant 0 : index
    %c0_7 = arith.constant 0 : index
    %8 = vector.load %arg2[%c1, %c0_6, %c0_7] : memref<9x32x16xbf16, #tpu.memory_space<vmem>>, vector<1x32x16xbf16>
    %9 = vector.shape_cast %8 : vector<1x32x16xbf16> to vector<32x16xbf16>
    %10 = vector.extract_strided_slice %1 {offsets = [0, 1], sizes = [16, 128], strides = [1, 1]} : vector<16x256xbf16> to vector<16x128xbf16>
    %cst_8 = arith.constant dense<0.000000e+00> : vector<32x128xf32>
    %11 = tpu.matmul %9, %10, %cst_8 {dimension_numbers = #tpu.dot_dimension_numbers<[1], [0], [0], [1], [0, 0, 1, 1], [], []>} : vector<32x16xbf16>, vector<16x128xbf16>, vector<32x128xf32> -> vector<32x128xf32>
    %12 = arith.addf %7, %11 : vector<32x128xf32>
    %c2 = arith.constant 2 : index
    %c0_9 = arith.constant 0 : index
    %c0_10 = arith.constant 0 : index
    %13 = vector.load %arg2[%c2, %c0_9, %c0_10] : memref<9x32x16xbf16, #tpu.memory_space<vmem>>, vector<1x32x16xbf16>
    %14 = vector.shape_cast %13 : vector<1x32x16xbf16> to vector<32x16xbf16>
    %15 = vector.extract_strided_slice %1 {offsets = [0, 2], sizes = [16, 128], strides = [1, 1]} : vector<16x256xbf16> to vector<16x128xbf16>
    %cst_11 = arith.constant dense<0.000000e+00> : vector<32x128xf32>
    %16 = tpu.matmul %14, %15, %cst_11 {dimension_numbers = #tpu.dot_dimension_numbers<[1], [0], [0], [1], [0, 0, 1, 1], [], []>} : vector<32x16xbf16>, vector<16x128xbf16>, vector<32x128xf32> -> vector<32x128xf32>
    %17 = arith.addf %12, %16 : vector<32x128xf32>
    %c3 = arith.constant 3 : index
    %c0_12 = arith.constant 0 : index
    %c0_13 = arith.constant 0 : index
    %18 = vector.load %arg2[%c3, %c0_12, %c0_13] : memref<9x32x16xbf16, #tpu.memory_space<vmem>>, vector<1x32x16xbf16>
    %19 = vector.shape_cast %18 : vector<1x32x16xbf16> to vector<32x16xbf16>
    %20 = vector.extract_strided_slice %1 {offsets = [0, 10], sizes = [16, 128], strides = [1, 1]} : vector<16x256xbf16> to vector<16x128xbf16>
    %cst_14 = arith.constant dense<0.000000e+00> : vector<32x128xf32>
    %21 = tpu.matmul %19, %20, %cst_14 {dimension_numbers = #tpu.dot_dimension_numbers<[1], [0], [0], [1], [0, 0, 1, 1], [], []>} : vector<32x16xbf16>, vector<16x128xbf16>, vector<32x128xf32> -> vector<32x128xf32>
    %22 = arith.addf %17, %21 : vector<32x128xf32>
    %c4 = arith.constant 4 : index
    %c0_15 = arith.constant 0 : index
    %c0_16 = arith.constant 0 : index
    %23 = vector.load %arg2[%c4, %c0_15, %c0_16] : memref<9x32x16xbf16, #tpu.memory_space<vmem>>, vector<1x32x16xbf16>
    %24 = vector.shape_cast %23 : vector<1x32x16xbf16> to vector<32x16xbf16>
    %25 = vector.extract_strided_slice %1 {offsets = [0, 11], sizes = [16, 128], strides = [1, 1]} : vector<16x256xbf16> to vector<16x128xbf16>
    %cst_17 = arith.constant dense<0.000000e+00> : vector<32x128xf32>
    %26 = tpu.matmul %24, %25, %cst_17 {dimension_numbers = #tpu.dot_dimension_numbers<[1], [0], [0], [1], [0, 0, 1, 1], [], []>} : vector<32x16xbf16>, vector<16x128xbf16>, vector<32x128xf32> -> vector<32x128xf32>
    %27 = arith.addf %22, %26 : vector<32x128xf32>
    %c5 = arith.constant 5 : index
    %c0_18 = arith.constant 0 : index
    %c0_19 = arith.constant 0 : index
    %28 = vector.load %arg2[%c5, %c0_18, %c0_19] : memref<9x32x16xbf16, #tpu.memory_space<vmem>>, vector<1x32x16xbf16>
    %29 = vector.shape_cast %28 : vector<1x32x16xbf16> to vector<32x16xbf16>
    %30 = vector.extract_strided_slice %1 {offsets = [0, 12], sizes = [16, 128], strides = [1, 1]} : vector<16x256xbf16> to vector<16x128xbf16>
    %cst_20 = arith.constant dense<0.000000e+00> : vector<32x128xf32>
    %31 = tpu.matmul %29, %30, %cst_20 {dimension_numbers = #tpu.dot_dimension_numbers<[1], [0], [0], [1], [0, 0, 1, 1], [], []>} : vector<32x16xbf16>, vector<16x128xbf16>, vector<32x128xf32> -> vector<32x128xf32>
    %32 = arith.addf %27, %31 : vector<32x128xf32>
    %c6 = arith.constant 6 : index
    %c0_21 = arith.constant 0 : index
    %c0_22 = arith.constant 0 : index
    %33 = vector.load %arg2[%c6, %c0_21, %c0_22] : memref<9x32x16xbf16, #tpu.memory_space<vmem>>, vector<1x32x16xbf16>
    %34 = vector.shape_cast %33 : vector<1x32x16xbf16> to vector<32x16xbf16>
    %35 = vector.extract_strided_slice %1 {offsets = [0, 20], sizes = [16, 128], strides = [1, 1]} : vector<16x256xbf16> to vector<16x128xbf16>
    %cst_23 = arith.constant dense<0.000000e+00> : vector<32x128xf32>
    %36 = tpu.matmul %34, %35, %cst_23 {dimension_numbers = #tpu.dot_dimension_numbers<[1], [0], [0], [1], [0, 0, 1, 1], [], []>} : vector<32x16xbf16>, vector<16x128xbf16>, vector<32x128xf32> -> vector<32x128xf32>
    %37 = arith.addf %32, %36 : vector<32x128xf32>
    %c7 = arith.constant 7 : index
    %c0_24 = arith.constant 0 : index
    %c0_25 = arith.constant 0 : index
    %38 = vector.load %arg2[%c7, %c0_24, %c0_25] : memref<9x32x16xbf16, #tpu.memory_space<vmem>>, vector<1x32x16xbf16>
    %39 = vector.shape_cast %38 : vector<1x32x16xbf16> to vector<32x16xbf16>
    %40 = vector.extract_strided_slice %1 {offsets = [0, 21], sizes = [16, 128], strides = [1, 1]} : vector<16x256xbf16> to vector<16x128xbf16>
    %cst_26 = arith.constant dense<0.000000e+00> : vector<32x128xf32>
    %41 = tpu.matmul %39, %40, %cst_26 {dimension_numbers = #tpu.dot_dimension_numbers<[1], [0], [0], [1], [0, 0, 1, 1], [], []>} : vector<32x16xbf16>, vector<16x128xbf16>, vector<32x128xf32> -> vector<32x128xf32>
    %42 = arith.addf %37, %41 : vector<32x128xf32>
    %c8 = arith.constant 8 : index
    %c0_27 = arith.constant 0 : index
    %c0_28 = arith.constant 0 : index
    %43 = vector.load %arg2[%c8, %c0_27, %c0_28] : memref<9x32x16xbf16, #tpu.memory_space<vmem>>, vector<1x32x16xbf16>
    %44 = vector.shape_cast %43 : vector<1x32x16xbf16> to vector<32x16xbf16>
    %45 = vector.extract_strided_slice %1 {offsets = [0, 22], sizes = [16, 128], strides = [1, 1]} : vector<16x256xbf16> to vector<16x128xbf16>
    %cst_29 = arith.constant dense<0.000000e+00> : vector<32x128xf32>
    %46 = tpu.matmul %44, %45, %cst_29 {dimension_numbers = #tpu.dot_dimension_numbers<[1], [0], [0], [1], [0, 0, 1, 1], [], []>} : vector<32x16xbf16>, vector<16x128xbf16>, vector<32x128xf32> -> vector<32x128xf32>
    %47 = arith.addf %42, %46 : vector<32x128xf32>
    %c0_30 = arith.constant 0 : index
    %c0_31 = arith.constant 0 : index
    %48 = vector.load %arg3[%c0_30, %c0_31] : memref<32x1xf32, #tpu.memory_space<vmem>>, vector<32x1xf32>
    %49 = vector.broadcast %48 : vector<32x1xf32> to vector<32x128xf32>
    %50 = arith.addf %47, %49 : vector<32x128xf32>
    %c0_32 = arith.constant 0 : index
    %c0_33 = arith.constant 0 : index
    %c0_34 = arith.constant 0 : index
    %51 = vector.load %arg4[%c0_32, %c0_33, %c0_34] : memref<1x32x128xf32, #tpu.memory_space<vmem>>, vector<1x32x128xf32>
    %52 = vector.shape_cast %51 : vector<1x32x128xf32> to vector<32x128xf32>
    %53 = vector.shape_cast %50 : vector<32x128xf32> to vector<1x32x128xf32>
    tpu.vector_store %arg4[%c0_32, %c0_33, %c0_34], %53 {strides = array<i32>} : memref<1x32x128xf32, #tpu.memory_space<vmem>>, vector<1x32x128xf32>,
    return
  }
  func.func @transform_0(%arg0: i32) -> (i32, i32, i32) {
    %c0_i32 = arith.constant 0 : i32
    %c0_i32_0 = arith.constant 0 : i32
    %c0_i32_1 = arith.constant 0 : i32
    return %arg0, %c0_i32, %c0_i32_0 : i32, i32, i32
  }
  func.func @transform_1(%arg0: i32) -> (i32, i32, i32) {
    %c0_i32 = arith.constant 0 : i32
    %c0_i32_0 = arith.constant 0 : i32
    %c0_i32_1 = arith.constant 0 : i32
    %c0_i32_2 = arith.constant 0 : i32
    return %c0_i32, %c0_i32_0, %c0_i32_1 : i32, i32, i32
  }
  func.func @transform_2(%arg0: i32) -> (i32, i32) {
    %c0_i32 = arith.constant 0 : i32
    %c0_i32_0 = arith.constant 0 : i32
    %c0_i32_1 = arith.constant 0 : i32
    return %c0_i32, %c0_i32_0 : i32, i32
  }
  func.func @transform_3(%arg0: i32) -> (i32, i32, i32) {
    %c0_i32 = arith.constant 0 : i32
    %c0_i32_0 = arith.constant 0 : i32
    %c0_i32_1 = arith.constant 0 : i32
    return %arg0, %c0_i32, %c0_i32_0 : i32, i32, i32
  }
}

</mosaic_0001>

<llo_original>
// kernel: resdown_forward.3
$region0: #{resdown_forward.3}
  #allocation0 [shape = 'u32[]', space=smem, size = 0x4, offset = 0x4, fixed_abs, tag = 'smem constant byte address 0x4 - core index']
  #allocation1 [shape = 'u32[144,128]{1,0:T(1,128)}', space=vmem, size = 0x12000, scoped, tag = 'internal scratch']
  %s0 = inlined_call_operand.vmem [shape: f32[16,512], index: 0, kind: input, shape index: {}]
  %s1 = inlined_call_operand.vmem [shape: f32[16,1], index: 1, kind: input, shape index: {}]
  %s2 = inlined_call_operand.vmem [shape: f32[16,1], index: 2, kind: input, shape index: {}]
  %s3 = inlined_call_operand.vmem [shape: bf16[16,512], index: 3, kind: output, shape index: {}]
  %s4 = sld [smem:[#allocation0]]
  $region102: #{resdown_forward.3} parent=0
    _
  %s6 = ssub.s32 1, %s4
  %s7 = scalar_select 0, %s6, %s4
  $region1: #{resdown_forward.3} parent=0
    #allocation2 [shape = 'u8[32768]{0}', space=vmem, size = 0x8000, scoped, tag = 'input window, operand 0']
    #allocation3 [shape = 'u8[16384]{0}', space=vmem, size = 0x4000, scoped, tag = 'output window, operand 0']
    loop: start=0, step=1, limit=4
    $region2: #{resdown_forward.3} parent=1 // loop_pre_header
      _
    $region3: #{resdown_forward.3} parent=1 // loop_header
      %s9 = sphi 0, %s13
      %p10 = scmp.ge.s32.totalorder %s9, 4
      %s19 = sphi 0, %s21
      %s22 = sphi 0, %s19
      %s23 = sphi 0, %s22
      %s39 = sphi 0, %s23
      %s43 = sphi 0, %s43
      %s45 = sphi 0, %s43
      %s46 = sphi 0, %s45
      %s60 = sphi 0, %s46
      %s64 = sphi 0, %s64
      %s66 = sphi 0, %s64
      %s67 = sphi 0, %s66
      %s81 = sphi 0, %s67
      %s87 = sphi 0, %s89
      %s90 = sphi 0, %s87
      %s91 = sphi 0, %s90
      %s107 = sphi 0, %s91
    $region4: #{resdown_forward.3} parent=1 // loop_header_branch
      %12 = sbr.rel (%p10) target = $region8
    $region5: #{resdown_forward.3} parent=1 // loop_body
      %s14 = ssub.s32 %s9, 1
      %s15 = ssub.s32 %s9, 2
      %s16 = sadd.s32 %s9, 1
      %s17 = ssub.s32 %s9, %s16
      %p18 = scmp.eq.s32.totalorder %s17, 0
      %s20 = sadd.s32 %s19, 1
      %s21 = scalar_select %p18, %s19, %s20
      %p24 = pneg %p18
      %p25 = scmp.eq.s32.totalorder %s9, 1
      %p26 = por %p24, %p25
      %p27 = scmp.ne.s32.totalorder %s19, %s22
      %p28 = scmp.eq.s32.totalorder %s9, 0
      %p29 = por %p27, %p28
      %p30 = scmp.ne.s32.totalorder %s19, %s22
      %p31 = scmp.eq.s32.totalorder %s14, 1
      %p32 = por %p30, %p31
      %p33 = scmp.ne.s32.totalorder %s22, %s23
      %p34 = scmp.eq.s32.totalorder %s14, 0
      %p35 = por %p33, %p34
      %p36 = scmp.ne.s32.totalorder %s22, %s23
      %p37 = scmp.eq.s32.totalorder %s15, 1
      %p38 = por %p36, %p37
      %p40 = scmp.ne.s32.totalorder %s23, %s39
      %p41 = scmp.eq.s32.totalorder %s15, 0
      %p42 = por %p40, %p41
      %s44 = sadd.s32 %s43, 1
      %p47 = scmp.eq.s32.totalorder %s9, 1
      %p48 = scmp.ne.s32.totalorder %s43, %s45
      %p49 = scmp.eq.s32.totalorder %s9, 0
      %p50 = por %p48, %p49
      %p51 = scmp.ne.s32.totalorder %s43, %s45
      %p52 = scmp.eq.s32.totalorder %s14, 1
      %p53 = por %p51, %p52
      %p54 = scmp.ne.s32.totalorder %s45, %s46
      %p55 = scmp.eq.s32.totalorder %s14, 0
      %p56 = por %p54, %p55
      %p57 = scmp.ne.s32.totalorder %s45, %s46
      %p58 = scmp.eq.s32.totalorder %s15, 1
      %p59 = por %p57, %p58
      %p61 = scmp.ne.s32.totalorder %s46, %s60
      %p62 = scmp.eq.s32.totalorder %s15, 0
      %p63 = por %p61, %p62
      %s65 = sadd.s32 %s64, 1
      %p68 = scmp.eq.s32.totalorder %s9, 1
      %p69 = scmp.ne.s32.totalorder %s64, %s66
      %p70 = scmp.eq.s32.totalorder %s9, 0
      %p71 = por %p69, %p70
      %p72 = scmp.ne.s32.totalorder %s64, %s66
      %p73 = scmp.eq.s32.totalorder %s14, 1
      %p74 = por %p72, %p73
      %p75 = scmp.ne.s32.totalorder %s66, %s67
      %p76 = scmp.eq.s32.totalorder %s14, 0
      %p77 = por %p75, %p76
      %p78 = scmp.ne.s32.totalorder %s66, %s67
      %p79 = scmp.eq.s32.totalorder %s15, 1
      %p80 = por %p78, %p79
      %p82 = scmp.ne.s32.totalorder %s67, %s81
      %p83 = scmp.eq.s32.totalorder %s15, 0
      %p84 = por %p82, %p83
      %s85 = ssub.s32 %s9, %s16
      %p86 = scmp.eq.s32.totalorder %s85, 0
      %s88 = sadd.s32 %s87, 1
      %s89 = scalar_select %p86, %s87, %s88
      %p92 = pneg %p86
      %p93 = scmp.eq.s32.totalorder %s9, 1
      %p94 = por %p92, %p93
      %p95 = scmp.ne.s32.totalorder %s87, %s90
      %p96 = scmp.eq.s32.totalorder %s9, 0
      %p97 = por %p95, %p96
      %p98 = scmp.ne.s32.totalorder %s87, %s90
      %p99 = scmp.eq.s32.totalorder %s14, 1
      %p100 = por %p98, %p99
      %p101 = scmp.ne.s32.totalorder %s90, %s91
      %p102 = scmp.eq.s32.totalorder %s14, 0
      %p103 = por %p101, %p102
      %p104 = scmp.ne.s32.totalorder %s90, %s91
      %p105 = scmp.eq.s32.totalorder %s15, 1
      %p106 = por %p104, %p105
      %p108 = scmp.ne.s32.totalorder %s91, %s107
      %p109 = scmp.eq.s32.totalorder %s15, 0
      %p110 = por %p108, %p109
      %p111 = scmp.le.s32.totalorder 1, %s9
      %p112 = scmp.lt.s32.totalorder %s9, 3
      %p113 = pnand %p111, %p112
      %p114 = pneg %p113
      // Predicated region
      $region9: #{resdown_forward.3} parent=5 // pred_check
        _
      $region10: #{resdown_forward.3} parent=5 // pred_check_branch
        %116 = sbr.rel (%p113) target = $region12
      $region11: #{resdown_forward.3} parent=5 // pred_region
        %s117 = ssub.s32 %s9, 1
        // Predicated region
        $region13: #{resdown_forward.3} parent=11 // pred_check
          %p118 = pneg %p56
        $region14: #{resdown_forward.3} parent=11 // pred_check_branch
          %120 = sbr.rel (%p118) target = $region16
        $region15: #{resdown_forward.3} parent=11 // pred_region
          _
        $region16: #{resdown_forward.3} parent=11 // pred_fallthru
          _
        // Predicated region
        $region17: #{resdown_forward.3} parent=11 // pred_check
          %p121 = pneg %p77
        $region18: #{resdown_forward.3} parent=11 // pred_check_branch
          %123 = sbr.rel (%p121) target = $region20
        $region19: #{resdown_forward.3} parent=11 // pred_region
          _
        $region20: #{resdown_forward.3} parent=11 // pred_fallthru
          _
      $region12: #{resdown_forward.3} parent=5 // pred_fallthru
        _
      %p124 = scmp.lt.s32.totalorder %s9, 2
      // Predicated region
      $region21: #{resdown_forward.3} parent=5 // pred_check
        %p125 = pneg %p124
      $region22: #{resdown_forward.3} parent=5 // pred_check_branch
        %127 = sbr.rel (%p125) target = $region24
      $region23: #{resdown_forward.3} parent=5 // pred_region
        // Predicated region
        $region25: #{resdown_forward.3} parent=23 // pred_check
          %p128 = pneg %p29
        $region26: #{resdown_forward.3} parent=23 // pred_check_branch
          %130 = sbr.rel (%p128) target = $region28
        $region27: #{resdown_forward.3} parent=23 // pred_region
          %s131 = sand.u32 %s19, 1
          %s132 = sand.u32 %s19, 1
          %s133 = smul.addr %s132, 32
          %s134 = scalar_lea.vmem [#allocation2], %s133
          %s135 = smul.u32 2, %s9
          %s136 = smul.addr %s135, 8
          %s137 = scalar_lea.vmem %s0, %s136
          // Predicated region
          $region29: #{resdown_forward.3} parent=27 // pred_check
            _
          $region30: #{resdown_forward.3} parent=27 // pred_check_branch
            %139 = sbr.rel (0) target = $region32
          $region31: #{resdown_forward.3} parent=27 // pred_region
            // Predicated region
            $region33: #{resdown_forward.3} parent=31 // pred_check
              _
            $region34: #{resdown_forward.3} parent=31 // pred_check_branch
              %141 = sbr.rel (0) target = $region36
            $region35: #{resdown_forward.3} parent=31 // pred_region
              loop: start=0, step=1, limit=1
              $region37: #{resdown_forward.3} parent=35 // loop_pre_header
                _
              $region38: #{resdown_forward.3} parent=35 // loop_header
                %s143 = sphi 0, %s147
                %p144 = scmp.ge.s32.totalorder %s143, 1
                %s148 = sphi %s137, %s137
                %s149 = sphi %s134, %s134
              $region39: #{resdown_forward.3} parent=35 // loop_header_branch
                %146 = sbr.rel (%p144) target = $region43
              $region40: #{resdown_forward.3} parent=35 // loop_body
                %v150 = vld [vmem:[%s148] sm:$0xff]
                %151 = vst [vmem:[%s149] sm:$0xff] %v150
                %v152 = vld [vmem:[%s148 + $0x8] sm:$0xff]
                %153 = vst [vmem:[%s149 + $0x8] sm:$0xff] %v152
                %v154 = vld [vmem:[%s148 + $0x20] sm:$0xff]
                %155 = vst [vmem:[%s149 + $0x10] sm:$0xff] %v154
                %v156 = vld [vmem:[%s148 + $0x28] sm:$0xff]
                %157 = vst [vmem:[%s149 + $0x18] sm:$0xff] %v156
              $region41: #{resdown_forward.3} parent=35 // loop_footer
                %s147 = sadd.s32 1, %s143
              $region42: #{resdown_forward.3} parent=35 // loop_footer_branch
                %142 = sbr.rel target = $region38
              $region43: #{resdown_forward.3} parent=35 // loop_exit
                _
            $region36: #{resdown_forward.3} parent=31 // pred_fallthru
              _
            // Predicated region
            $region44: #{resdown_forward.3} parent=31 // pred_check
              _
            $region45: #{resdown_forward.3} parent=31 // pred_check_branch
              %159 = sbr.rel target = $region47
            $region46: #{resdown_forward.3} parent=31 // pred_region
              _
            $region47: #{resdown_forward.3} parent=31 // pred_fallthru
              _
          $region32: #{resdown_forward.3} parent=27 // pred_fallthru
            _
          %160 = vnop
        $region28: #{resdown_forward.3} parent=23 // pred_fallthru
          _
      $region24: #{resdown_forward.3} parent=5 // pred_fallthru
        _
      %p161 = scmp.le.s32.totalorder 1, %s9
      %p162 = scmp.lt.s32.totalorder %s9, 3
      %p163 = pnand %p161, %p162
      %p164 = pneg %p163
      // Predicated region
      $region48: #{resdown_forward.3} parent=5 // pred_check
        _
      $region49: #{resdown_forward.3} parent=5 // pred_check_branch
        %166 = sbr.rel (%p163) target = $region51
      $region50: #{resdown_forward.3} parent=5 // pred_region
        %s167 = ssub.s32 %s9, 1
        %s168 = sand.u32 %s22, 1
        %s169 = sand.u32 %s22, 1
        %s170 = smul.addr %s169, 32
        %s171 = scalar_lea.vmem [#allocation2], %s170
        // Predicated region
        $region52: #{resdown_forward.3} parent=50 // pred_check
          %p172 = pneg %p35
        $region53: #{resdown_forward.3} parent=50 // pred_check_branch
          %174 = sbr.rel (%p172) target = $region55
        $region54: #{resdown_forward.3} parent=50 // pred_region
          _
        $region55: #{resdown_forward.3} parent=50 // pred_fallthru
          _
        %s175 = sand.u32 %s22, 1
        %s176 = sand.u32 %s22, 1
        %s177 = smul.addr %s176, 32
        %s178 = scalar_lea.vmem [#allocation2], %s177
        %p179 = pneg %p35
        %p180 = pneg %p32
        %p181 = pneg %p56
        %p182 = pneg %p53
        %p183 = pneg %p77
        %p184 = pneg %p74
        %p185 = pneg %p103
        %p186 = pneg %p100
        %s187 = sand.u32 %s90, 1
        %s188 = sand.u32 %s90, 1
        %s189 = smul.addr %s188, 16
        %s190 = scalar_lea.vmem [#allocation3], %s189
        %s191 = smul.u32 2, %s14
        %s192 = smul.u32 2, %s14
        %v193 = vld [vmem:[%s171] sm:$0xff]
        %v194 = vld [vmem:[%s171 + $0x8] sm:$0xff]
        %v195 = vld [vmem:[%s171 + $0x10] sm:$0xff]
        %v196 = vld [vmem:[%s171 + $0x18] sm:$0xff]
        %v197 = vld [vmem:[%s1] sm:$0xff]
        %v198 = vld [vmem:[%s1 + $0x8] sm:$0xff]
        %200 = vset.pattern.permute.xlu0 0
        %201 = vperm.xlu0 %200, %v197
        %v202 = vpop.permute.xlu0 %201
        %205 = vset.pattern.permute.xlu0 0
        %206 = vperm.xlu0 %205, %v198
        %v207 = vpop.permute.xlu0 %206
        %v209 = vmul.f32 %v193, %v202
        %v210 = vmul.f32 %v194, %v202
        %v211 = vmul.f32 %v195, %v207
        %v212 = vmul.f32 %v196, %v207
        %v213 = vld [vmem:[%s2] sm:$0xff]
        %v214 = vld [vmem:[%s2 + $0x8] sm:$0xff]
        %216 = vset.pattern.permute.xlu0 0
        %217 = vperm.xlu0 %216, %v213
        %v218 = vpop.permute.xlu0 %217
        %221 = vset.pattern.permute.xlu0 0
        %222 = vperm.xlu0 %221, %v214
        %v223 = vpop.permute.xlu0 %222
        %v225 = vadd.f32 %v209, %v218
        %v226 = vadd.f32 %v210, %v218
        %v227 = vadd.f32 %v211, %v223
        %v228 = vadd.f32 %v212, %v223
        %vm229 = vcmp.gt.f32.partialorder %v225, 0.0
        %vm230 = vcmp.gt.f32.partialorder %v226, 0.0
        %vm231 = vcmp.gt.f32.partialorder %v227, 0.0
        %vm232 = vcmp.gt.f32.partialorder %v228, 0.0
        %v233 = vmin.f32 %v225, 0.0
        %v234 = vmin.f32 %v226, 0.0
        %v235 = vmin.f32 %v227, 0.0
        %v236 = vmin.f32 %v228, 0.0
        %v237 = vmul.f32 %v233, 1.442695
        %v238 = vpow.pop %v237
        %v239 = vmul.f32 %v234, 1.442695
        %v240 = vpow.pop %v239
        %v241 = vmul.f32 %v235, 1.442695
        %v242 = vpow.pop %v241
        %v243 = vmul.f32 %v236, 1.442695
        %v244 = vpow.pop %v243
        %v245 = vsub.f32 %v238, 1.0
        %v246 = vsub.f32 %v240, 1.0
        %v247 = vsub.f32 %v242, 1.0
        %v248 = vsub.f32 %v244, 1.0
        %v249 = vsel %vm229, %v225, %v245
        %v250 = vsel %vm230, %v226, %v246
        %v251 = vsel %vm231, %v227, %v247
        %v252 = vsel %vm232, %v228, %v248
        %v253 = vpack.c.bf16 %v251, %v249
        %v254 = vpack.c.bf16 %v252, %v250
        %v257 = vunpack.c.l.b16 %v253
        %v258 = vunpack.c.l.b16 %v254
        %v259 = vunpack.c.h.b16 %v253
        %v260 = vunpack.c.h.b16 %v254
        %v261 = vpack.c.b16 %v258, %v257
        %v262 = vpack.c.b16 %v260, %v259
        %265 = vst [vmem:[%s190] sm:$0xff] %v261
        %266 = vst [vmem:[%s190 + $0x8] sm:$0xff] %v262
        %s267 = sand.u32 %s90, 1
        %s268 = sand.u32 %s90, 1
        %s269 = smul.addr %s268, 16
        %s270 = scalar_lea.vmem [#allocation3], %s269
        // Predicated region
        $region56: #{resdown_forward.3} parent=50 // pred_check
          %p271 = pneg %p100
        $region57: #{resdown_forward.3} parent=50 // pred_check_branch
          %273 = sbr.rel (%p271) target = $region59
        $region58: #{resdown_forward.3} parent=50 // pred_region
          %s274 = smul.u32 2, %s14
          %s275 = smul.addr %s274, 4
          %s276 = scalar_lea.vmem %s3, %s275
          // Predicated region
          $region60: #{resdown_forward.3} parent=58 // pred_check
            _
          $region61: #{resdown_forward.3} parent=58 // pred_check_branch
            %278 = sbr.rel (0) target = $region63
          $region62: #{resdown_forward.3} parent=58 // pred_region
            // Predicated region
            $region64: #{resdown_forward.3} parent=62 // pred_check
              _
            $region65: #{resdown_forward.3} parent=62 // pred_check_branch
              %280 = sbr.rel (0) target = $region67
            $region66: #{resdown_forward.3} parent=62 // pred_region
              // Predicated region
              $region79: #{resdown_forward.3} parent=66 // pred_check
                _
              $region80: #{resdown_forward.3} parent=66 // pred_check_branch
                %297 = sbr.rel (0) target = $region82
              $region81: #{resdown_forward.3} parent=66 // pred_region
                loop: start=0, step=1, limit=1
                $region83: #{resdown_forward.3} parent=81 // loop_pre_header
                  _
                $region84: #{resdown_forward.3} parent=81 // loop_header
                  %s299 = sphi 0, %s303
                  %p300 = scmp.ge.s32.totalorder %s299, 1
                  %s304 = sphi %s270, %s270
                  %s305 = sphi %s276, %s276
                $region85: #{resdown_forward.3} parent=81 // loop_header_branch
                  %302 = sbr.rel (%p300) target = $region89
                $region86: #{resdown_forward.3} parent=81 // loop_body
                  %v306 = vld [vmem:[%s304] sm:$0xff]
                  %307 = vst [vmem:[%s305] sm:$0xff] %v306
                  %v308 = vld [vmem:[%s304 + $0x8] sm:$0xff]
                  %309 = vst [vmem:[%s305 + $0x10] sm:$0xff] %v308
                $region87: #{resdown_forward.3} parent=81 // loop_footer
                  %s303 = sadd.s32 1, %s299
                $region88: #{resdown_forward.3} parent=81 // loop_footer_branch
                  %298 = sbr.rel target = $region84
                $region89: #{resdown_forward.3} parent=81 // loop_exit
                  _
              $region82: #{resdown_forward.3} parent=66 // pred_fallthru
                _
              // Predicated region
              $region90: #{resdown_forward.3} parent=66 // pred_check
                _
              $region91: #{resdown_forward.3} parent=66 // pred_check_branch
                %311 = sbr.rel target = $region93
              $region92: #{resdown_forward.3} parent=66 // pred_region
                _
              $region93: #{resdown_forward.3} parent=66 // pred_fallthru
                _
            $region67: #{resdown_forward.3} parent=62 // pred_fallthru
              _
            // Predicated region
            $region68: #{resdown_forward.3} parent=62 // pred_check
              _
            $region69: #{resdown_forward.3} parent=62 // pred_check_branch
              %282 = sbr.rel target = $region71
            $region70: #{resdown_forward.3} parent=62 // pred_region
              loop: start=0, step=1, limit=1
              $region72: #{resdown_forward.3} parent=70 // loop_pre_header
                _
              $region73: #{resdown_forward.3} parent=70 // loop_header
                %s285 = sphi 0, %s289
                %p286 = scmp.ge.s32.totalorder %s285, 1
                %s290 = sphi %s270, %s270
                %s291 = sphi %s276, %s276
              $region74: #{resdown_forward.3} parent=70 // loop_header_branch
                %288 = sbr.rel (%p286) target = $region78
              $region75: #{resdown_forward.3} parent=70 // loop_body
                %v292 = vld [vmem:[%s290] sm:$0xff]
                %293 = vst [vmem:[%s291] sm:$0xff] %v292
                %v294 = vld [vmem:[%s290 + $0x8] sm:$0xff]
                %295 = vst [vmem:[%s291 + $0x10] sm:$0xff] %v294
              $region76: #{resdown_forward.3} parent=70 // loop_footer
                %s289 = sadd.s32 1, %s285
              $region77: #{resdown_forward.3} parent=70 // loop_footer_branch
                %284 = sbr.rel target = $region73
              $region78: #{resdown_forward.3} parent=70 // loop_exit
                _
            $region71: #{resdown_forward.3} parent=62 // pred_fallthru
              _
          $region63: #{resdown_forward.3} parent=58 // pred_fallthru
            _
          %312 = vnop
        $region59: #{resdown_forward.3} parent=50 // pred_fallthru
          _
      $region51: #{resdown_forward.3} parent=5 // pred_fallthru
        _
      %p313 = scmp.le.s32.totalorder 2, %s9
      // Predicated region
      $region94: #{resdown_forward.3} parent=5 // pred_check
        %p314 = pneg %p313
      $region95: #{resdown_forward.3} parent=5 // pred_check_branch
        %316 = sbr.rel (%p314) target = $region97
      $region96: #{resdown_forward.3} parent=5 // pred_region
        %s317 = ssub.s32 %s9, 2
        // Predicated region
        $region98: #{resdown_forward.3} parent=96 // pred_check
          %p318 = pneg %p106
        $region99: #{resdown_forward.3} parent=96 // pred_check_branch
          %320 = sbr.rel (%p318) target = $region101
        $region100: #{resdown_forward.3} parent=96 // pred_region
          %s321 = sand.u32 %s91, 1
          %s322 = sand.u32 %s91, 1
          %s323 = smul.addr %s322, 16
          %s324 = scalar_lea.vmem [#allocation3], %s323
        $region101: #{resdown_forward.3} parent=96 // pred_fallthru
          _
      $region97: #{resdown_forward.3} parent=5 // pred_fallthru
        _
    $region6: #{resdown_forward.3} parent=1 // loop_footer
      %s13 = sadd.s32 1, %s9
    $region7: #{resdown_forward.3} parent=1 // loop_footer_branch
      %8 = sbr.rel target = $region3
    $region8: #{resdown_forward.3} parent=1 // loop_exit
      _

// kernel: resdown_forward.4
$region0: #{resdown_forward.4}
  #allocation0 [shape = 'u32[]', space=smem, size = 0x4, offset = 0x4, fixed_abs, tag = 'smem constant byte address 0x4 - core index']
  #allocation1 [shape = 'u32[144,128]{1,0:T(1,128)}', space=vmem, size = 0x12000, scoped, tag = 'internal scratch']
  %s0 = inlined_call_operand.vmem [shape: bf16[144,128], index: 0, kind: input, shape index: {}]
  %s1 = inlined_call_operand.vmem [shape: bf16[32,144], index: 1, kind: input, shape index: {}]
  %s2 = inlined_call_operand.vmem [shape: f32[32,1], index: 2, kind: input, shape index: {}]
  %s3 = inlined_call_operand.vmem [shape: bf16[16,144], index: 3, kind: input, shape index: {}]
  %s4 = inlined_call_operand.vmem [shape: f32[16,1], index: 4, kind: input, shape index: {}]
  %s5 = inlined_call_operand.vmem [shape: f32[16,1], index: 5, kind: input, shape index: {}]
  %s6 = inlined_call_operand.vmem [shape: f32[32,128], index: 6, kind: output, shape index: {0}]
  %s7 = inlined_call_operand.vmem [shape: bf16[16,128], index: 7, kind: output, shape index: {1}]
  %8 = xla_tuple %s6, %s7
  %s9 = sld [smem:[#allocation0]]
  $region42: #{resdown_forward.4} parent=0
    _
  %s11 = ssub.s32 1, %s9
  %s12 = scalar_select 0, %s11, %s9
  // Predicated region
  $region2: #{resdown_forward.4} parent=0 // pred_check
    _
  $region3: #{resdown_forward.4} parent=0 // pred_check_branch
    %14 = sbr.rel (0) target = $region5
  $region4: #{resdown_forward.4} parent=0 // pred_region
    _
  $region5: #{resdown_forward.4} parent=0 // pred_fallthru
    _
  // Predicated region
  $region6: #{resdown_forward.4} parent=0 // pred_check
    _
  $region7: #{resdown_forward.4} parent=0 // pred_check_branch
    %16 = sbr.rel (0) target = $region9
  $region8: #{resdown_forward.4} parent=0 // pred_region
    _
  $region9: #{resdown_forward.4} parent=0 // pred_fallthru
    _
  // Predicated region
  $region10: #{resdown_forward.4} parent=0 // pred_check
    _
  $region11: #{resdown_forward.4} parent=0 // pred_check_branch
    %18 = sbr.rel (0) target = $region13
  $region12: #{resdown_forward.4} parent=0 // pred_region
    _
  $region13: #{resdown_forward.4} parent=0 // pred_fallthru
    _
  // Predicated region
  $region14: #{resdown_forward.4} parent=0 // pred_check
    _
  $region15: #{resdown_forward.4} parent=0 // pred_check_branch
    %20 = sbr.rel (0) target = $region17
  $region16: #{resdown_forward.4} parent=0 // pred_region
    _
  $region17: #{resdown_forward.4} parent=0 // pred_fallthru
    _
  // Predicated region
  $region18: #{resdown_forward.4} parent=0 // pred_check
    _
  $region19: #{resdown_forward.4} parent=0 // pred_check_branch
    %22 = sbr.rel (0) target = $region21
  $region20: #{resdown_forward.4} parent=0 // pred_region
    _
  $region21: #{resdown_forward.4} parent=0 // pred_fallthru
    _
  // Predicated region
  $region22: #{resdown_forward.4} parent=0 // pred_check
    _
  $region23: #{resdown_forward.4} parent=0 // pred_check_branch
    %24 = sbr.rel (0) target = $region25
  $region24: #{resdown_forward.4} parent=0 // pred_region
    _
  $region25: #{resdown_forward.4} parent=0 // pred_fallthru
    _
  %v26 = vld [vmem:[%s0] sm:$0xf]
  %v27 = vld [vmem:[%s0 + $0x4] sm:$0xf]
  %v28 = vld [vmem:[%s0 + $0x8] sm:$0xf]
  %v29 = vld [vmem:[%s0 + $0xc] sm:$0xf]
  %v30 = vld [vmem:[%s0 + $0x10] sm:$0xf]
  %v31 = vld [vmem:[%s0 + $0x14] sm:$0xf]
  %v32 = vld [vmem:[%s0 + $0x18] sm:$0xf]
  %v33 = vld [vmem:[%s0 + $0x1c] sm:$0xf]
  %v34 = vld [vmem:[%s0 + $0x20] sm:$0xf]
  %v35 = vld [vmem:[%s0 + $0x24] sm:$0xf]
  %v36 = vld [vmem:[%s0 + $0x28] sm:$0xf]
  %v37 = vld [vmem:[%s0 + $0x2c] sm:$0xf]
  %v38 = vld [vmem:[%s0 + $0x30] sm:$0xf]
  %v39 = vld [vmem:[%s0 + $0x34] sm:$0xf]
  %v40 = vld [vmem:[%s0 + $0x38] sm:$0xf]
  %v41 = vld [vmem:[%s0 + $0x3c] sm:$0xf]
  %v42 = vld [vmem:[%s0 + $0x40] sm:$0xf]
  %v43 = vld [vmem:[%s0 + $0x44] sm:$0xf]
  %v44 = vld [vmem:[%s1] sm:$0xff]
  %v45 = vld [vmem:[%s1 + $0x8] sm:$0xff]
  %v46 = vld [vmem:[%s1 + $0x10] sm:$0xff]
  %v47 = vld [vmem:[%s1 + $0x18] sm:$0xff]
  %v48 = vld [vmem:[%s2] sm:$0xff]
  %v49 = vld [vmem:[%s2 + $0x8] sm:$0xff]
  %v50 = vld [vmem:[%s2 + $0x10] sm:$0xff]
  %v51 = vld [vmem:[%s2 + $0x18] sm:$0xff]
  %53 = vset.pattern.permute.xlu0 0
  %54 = vperm.xlu0 %53, %v48
  %v55 = vpop.permute.xlu0 %54
  %58 = vset.pattern.permute.xlu0 0
  %59 = vperm.xlu0 %58, %v49
  %v60 = vpop.permute.xlu0 %59
  %63 = vset.pattern.permute.xlu0 0
  %64 = vperm.xlu0 %63, %v50
  %v65 = vpop.permute.xlu0 %64
  %68 = vset.pattern.permute.xlu0 0
  %69 = vperm.xlu0 %68, %v51
  %v70 = vpop.permute.xlu0 %69
  %v76 = vunpack.c.l.b16 %v44
  %v77 = vunpack.c.h.b16 %v44
  %v78 = vunpack.c.l.b16 %v45
  %v79 = vunpack.c.h.b16 %v45
  %v80 = vunpack.c.l.b16 %v46
  %v81 = vunpack.c.h.b16 %v46
  %v82 = vunpack.c.l.b16 %v47
  %v83 = vunpack.c.h.b16 %v47
  %v84 = vpack.c.b16 %v78, %v76
  %v85 = vpack.c.b16 %v79, %v77
  %v86 = vpack.c.b16 %v82, %v80
  %v87 = vpack.c.b16 %v83, %v81
  %v108 = vunpack.c.l.b16 %v26
  %v109 = vunpack.c.l.b16 %v27
  %v110 = vunpack.c.l.b16 %v28
  %v111 = vunpack.c.l.b16 %v29
  %v112 = vunpack.c.l.b16 %v30
  %v113 = vunpack.c.l.b16 %v31
  %v114 = vunpack.c.l.b16 %v32
  %v115 = vunpack.c.l.b16 %v33
  %v116 = vunpack.c.l.b16 %v34
  %v117 = vunpack.c.l.b16 %v35
  %v118 = vunpack.c.l.b16 %v36
  %v119 = vunpack.c.l.b16 %v37
  %v120 = vunpack.c.l.b16 %v38
  %v121 = vunpack.c.l.b16 %v39
  %v122 = vunpack.c.l.b16 %v40
  %v123 = vunpack.c.l.b16 %v41
  %v124 = vunpack.c.l.b16 %v42
  %v125 = vunpack.c.l.b16 %v43
  %v126 = vpack.c.b16 %v109, %v108
  %v127 = vpack.c.b16 %v111, %v110
  %v128 = vpack.c.b16 %v113, %v112
  %v129 = vpack.c.b16 %v115, %v114
  %v130 = vpack.c.b16 %v117, %v116
  %v131 = vpack.c.b16 %v119, %v118
  %v132 = vpack.c.b16 %v121, %v120
  %v133 = vpack.c.b16 %v123, %v122
  %v134 = vpack.c.b16 %v125, %v124
  %vm144 = vcmask 130048
  %v146 = vsel %vm144, %v85, 0
  %v149 = vsel %vm144, %v87, 0
  %151 = vmatprep.subr.bf16.mxu0 0
  %152 = vmatpush1.bf16.msra.mxu0 %v126
  %153 = vmatprep.subr.bf16.mxu0 0
  %154 = vmatpush1.bf16.msra.mxu0 %v127
  %155 = vmatprep.subr.bf16.mxu0 0
  %156 = vmatpush1.bf16.msra.mxu0 %v128
  %157 = vmatprep.subr.bf16.mxu0 0
  %158 = vmatpush1.bf16.msra.mxu0 %v129
  %159 = vmatprep.subr.bf16.mxu0 0
  %160 = vmatpush1.bf16.msra.mxu0 %v130
  %161 = vmatprep.subr.bf16.mxu0 0
  %162 = vmatpush1.bf16.msra.mxu0 %v131
  %163 = vmatprep.subr.bf16.mxu0 0
  %164 = vmatpush1.bf16.msra.mxu0 %v132
  %165 = vmatprep.subr.bf16.mxu0 0
  %166 = vmatpush1.bf16.msra.mxu0 %v133
  %167 = vmatprep.subr.bf16.mxu0 0
  %168 = vmatpush1.bf16.msra.mxu0 %v134
  %169 = vmatprep.subr.bf16.mxu0 0
  %170 = vmatpush1.bf16.msra.mxu0 0
  %171 = vmatprep.subr.bf16.mxu0 0
  %172 = vmatpush1.bf16.msra.mxu0 0
  %173 = vmatprep.subr.bf16.mxu0 0
  %174 = vmatpush1.bf16.msra.mxu0 0
  %175 = vmatprep.subr.bf16.mxu0 0
  %176 = vmatpush1.bf16.msra.mxu0 0
  %177 = vmatprep.subr.bf16.mxu0 0
  %178 = vmatpush1.bf16.msra.mxu0 0
  %179 = vmatprep.subr.bf16.mxu0 0
  %180 = vmatpush1.bf16.msra.mxu0 0
  %181 = vmatprep.subr.bf16.mxu0 0
  %182 = vmatpush1.bf16.msra.mxu0 0
  %183 = vmatprep.mubr.bf16.mxu0 %v146
  %184 = vmatmul.mubr.bf16.gmra.mrb[0].mxu0 %v84
  %v185 = vpop.f32.mrb[0].mxu0
  %v186 = vadd.f32 %v55, %v185
  %v187 = vpop.f32.mrb[0].mxu0
  %v188 = vpop.f32.mrb[0].mxu0
  %v189 = vadd.f32 %v60, %v188
  %v190 = vpop.f32.mrb[0].mxu0
  %191 = vmatprep.mubr.bf16.mxu0 %v149
  %192 = vmatmul.mubr.bf16.gmra.mrb[0].mxu0 %v86
  %v193 = vpop.f32.mrb[0].mxu0
  %v194 = vadd.f32 %v65, %v193
  %v195 = vpop.f32.mrb[0].mxu0
  %v196 = vpop.f32.mrb[0].mxu0
  %v197 = vadd.f32 %v70, %v196
  %v198 = vpop.f32.mrb[0].mxu0
  %199 = vdwg.mxu0
  %200 = vst [vmem:[%s6] sm:$0xff] %v186
  %201 = vst [vmem:[%s6 + $0x8] sm:$0xff] %v189
  %202 = vst [vmem:[%s6 + $0x10] sm:$0xff] %v194
  %203 = vst [vmem:[%s6 + $0x18] sm:$0xff] %v197
  %v204 = vld [vmem:[%s3] sm:$0xff]
  %v205 = vld [vmem:[%s3 + $0x8] sm:$0xff]
  %v208 = vunpack.c.l.b16 %v204
  %v209 = vunpack.c.h.b16 %v204
  %v210 = vunpack.c.l.b16 %v205
  %v211 = vunpack.c.h.b16 %v205
  %v212 = vpack.c.b16 %v210, %v208
  %v213 = vpack.c.b16 %v211, %v209
  %v216 = vsel %vm144, %v213, 0
  %218 = vmatprep.subr.bf16.mxu0 0
  %219 = vmatpush1.bf16.msra.mxu0 %v126
  %220 = vmatprep.subr.bf16.mxu0 0
  %221 = vmatpush1.bf16.msra.mxu0 %v127
  %222 = vmatprep.subr.bf16.mxu0 0
  %223 = vmatpush1.bf16.msra.mxu0 %v128
  %224 = vmatprep.subr.bf16.mxu0 0
  %225 = vmatpush1.bf16.msra.mxu0 %v129
  %226 = vmatprep.subr.bf16.mxu0 0
  %227 = vmatpush1.bf16.msra.mxu0 %v130
  %228 = vmatprep.subr.bf16.mxu0 0
  %229 = vmatpush1.bf16.msra.mxu0 %v131
  %230 = vmatprep.subr.bf16.mxu0 0
  %231 = vmatpush1.bf16.msra.mxu0 %v132
  %232 = vmatprep.subr.bf16.mxu0 0
  %233 = vmatpush1.bf16.msra.mxu0 %v133
  %234 = vmatprep.subr.bf16.mxu0 0
  %235 = vmatpush1.bf16.msra.mxu0 %v134
  %236 = vmatprep.subr.bf16.mxu0 0
  %237 = vmatpush1.bf16.msra.mxu0 0
  %238 = vmatprep.subr.bf16.mxu0 0
  %239 = vmatpush1.bf16.msra.mxu0 0
  %240 = vmatprep.subr.bf16.mxu0 0
  %241 = vmatpush1.bf16.msra.mxu0 0
  %242 = vmatprep.subr.bf16.mxu0 0
  %243 = vmatpush1.bf16.msra.mxu0 0
  %244 = vmatprep.subr.bf16.mxu0 0
  %245 = vmatpush1.bf16.msra.mxu0 0
  %246 = vmatprep.subr.bf16.mxu0 0
  %247 = vmatpush1.bf16.msra.mxu0 0
  %248 = vmatprep.subr.bf16.mxu0 0
  %249 = vmatpush1.bf16.msra.mxu0 0
  %250 = vmatprep.mubr.bf16.mxu0 %v216
  %251 = vmatmul.mubr.bf16.gmra.mrb[0].mxu0 %v212
  %v252 = vpop.f32.mrb[0].mxu0
  %v253 = vadd.f32 0.0, %v252
  %v254 = vpop.f32.mrb[0].mxu0
  %v255 = vpop.f32.mrb[0].mxu0
  %v256 = vadd.f32 0.0, %v255
  %v257 = vpop.f32.mrb[0].mxu0
  %258 = vdwg.mxu0
  %v259 = vld [vmem:[%s4] sm:$0xff]
  %v260 = vld [vmem:[%s4 + $0x8] sm:$0xff]
  %262 = vset.pattern.permute.xlu0 0
  %263 = vperm.xlu0 %262, %v259
  %v264 = vpop.permute.xlu0 %263
  %267 = vset.pattern.permute.xlu0 0
  %268 = vperm.xlu0 %267, %v260
  %v269 = vpop.permute.xlu0 %268
  %v271 = vmul.f32 %v253, %v264
  %v272 = vmul.f32 %v256, %v269
  %v273 = vld [vmem:[%s5] sm:$0xff]
  %v274 = vld [vmem:[%s5 + $0x8] sm:$0xff]
  %276 = vset.pattern.permute.xlu0 0
  %277 = vperm.xlu0 %276, %v273
  %v278 = vpop.permute.xlu0 %277
  %281 = vset.pattern.permute.xlu0 0
  %282 = vperm.xlu0 %281, %v274
  %v283 = vpop.permute.xlu0 %282
  %v285 = vadd.f32 %v271, %v278
  %v286 = vadd.f32 %v272, %v283
  %vm287 = vcmp.gt.f32.partialorder %v285, 0.0
  %vm288 = vcmp.gt.f32.partialorder %v286, 0.0
  %v289 = vmin.f32 %v285, 0.0
  %v290 = vmin.f32 %v286, 0.0
  %v291 = vmul.f32 %v289, 1.442695
  %v292 = vpow.pop %v291
  %v293 = vmul.f32 %v290, 1.442695
  %v294 = vpow.pop %v293
  %v295 = vsub.f32 %v292, 1.0
  %v296 = vsub.f32 %v294, 1.0
  %v297 = vsel %vm287, %v285, %v295
  %v298 = vsel %vm288, %v286, %v296
  %v299 = vpack.c.bf16 %v298, %v297
  %v301 = vunpack.c.l.b16 %v299
  %v302 = vunpack.c.h.b16 %v299
  %v303 = vpack.c.b16 %v301, %v301
  %v304 = vpack.c.b16 %v302, %v302
  %307 = vst [vmem:[%s7] sm:$0xf] %v303
  %308 = vst [vmem:[%s7 + $0x4] sm:$0xf] %v304
  // Predicated region
  $region26: #{resdown_forward.4} parent=0 // pred_check
    _
  $region27: #{resdown_forward.4} parent=0 // pred_check_branch
    %310 = sbr.rel (0) target = $region29
  $region28: #{resdown_forward.4} parent=0 // pred_region
    _
  $region29: #{resdown_forward.4} parent=0 // pred_fallthru
    _
  // Predicated region
  $region30: #{resdown_forward.4} parent=0 // pred_check
    _
  $region31: #{resdown_forward.4} parent=0 // pred_check_branch
    %312 = sbr.rel (0) target = $region33
  $region32: #{resdown_forward.4} parent=0 // pred_region
    _
  $region33: #{resdown_forward.4} parent=0 // pred_fallthru
    _
  // Predicated region
  $region34: #{resdown_forward.4} parent=0 // pred_check
    _
  $region35: #{resdown_forward.4} parent=0 // pred_check_branch
    %314 = sbr.rel (0) target = $region37
  $region36: #{resdown_forward.4} parent=0 // pred_region
    _
  $region37: #{resdown_forward.4} parent=0 // pred_fallthru
    _
  // Predicated region
  $region38: #{resdown_forward.4} parent=0 // pred_check
    _
  $region39: #{resdown_forward.4} parent=0 // pred_check_branch
    %316 = sbr.rel (0) target = $region41
  $region40: #{resdown_forward.4} parent=0 // pred_region
    _
  $region41: #{resdown_forward.4} parent=0 // pred_fallthru
    _

// kernel: resdown_forward.5
$region0: #{resdown_forward.5}
  #allocation0 [shape = 'u32[]', space=smem, size = 0x4, offset = 0x4, fixed_abs, tag = 'smem constant byte address 0x4 - core index']
  #allocation1 [shape = 'u32[144,128]{1,0:T(1,128)}', space=vmem, size = 0x12000, scoped, tag = 'internal scratch']
  %s0 = inlined_call_operand.vmem [shape: bf16[2,16,256], index: 0, kind: input, shape index: {}]
  %s1 = inlined_call_operand.vmem [shape: bf16[9,32,16], index: 1, kind: input, shape index: {}]
  %s2 = inlined_call_operand.vmem [shape: f32[32,1], index: 2, kind: input, shape index: {}]
  %s3 = inlined_call_operand.vmem [shape: f32[2,32,128], index: 3, kind: output, shape index: {}]
  %s4 = sld [smem:[#allocation0]]
  $region45: #{resdown_forward.5} parent=0
    _
  %s6 = ssub.s32 1, %s4
  %s7 = scalar_select 0, %s6, %s4
  loop: start=0, step=1, limit=4
  $region2: #{resdown_forward.5} parent=0 // loop_pre_header
    _
  $region3: #{resdown_forward.5} parent=0 // loop_header
    %s9 = sphi 0, %s13
    %p10 = scmp.ge.s32.totalorder %s9, 4
    %s19 = sphi 0, %s21
    %s22 = sphi 0, %s19
    %s23 = sphi 0, %s22
    %s39 = sphi 0, %s23
    %s43 = sphi 0, %s43
    %s45 = sphi 0, %s43
    %s46 = sphi 0, %s45
    %s60 = sphi 0, %s46
    %s64 = sphi 0, %s64
    %s66 = sphi 0, %s64
    %s67 = sphi 0, %s66
    %s81 = sphi 0, %s67
    %s87 = sphi 0, %s89
    %s90 = sphi 0, %s87
    %s91 = sphi 0, %s90
    %s107 = sphi 0, %s91
  $region4: #{resdown_forward.5} parent=0 // loop_header_branch
    %12 = sbr.rel (%p10) target = $region8
  $region5: #{resdown_forward.5} parent=0 // loop_body
    %s14 = ssub.s32 %s9, 1
    %s15 = ssub.s32 %s9, 2
    %s16 = sadd.s32 %s9, 1
    %s17 = ssub.s32 %s9, %s16
    %p18 = scmp.eq.s32.totalorder %s17, 0
    %s20 = sadd.s32 %s19, 1
    %s21 = scalar_select %p18, %s19, %s20
    %p24 = pneg %p18
    %p25 = scmp.eq.s32.totalorder %s9, 1
    %p26 = por %p24, %p25
    %p27 = scmp.ne.s32.totalorder %s19, %s22
    %p28 = scmp.eq.s32.totalorder %s9, 0
    %p29 = por %p27, %p28
    %p30 = scmp.ne.s32.totalorder %s19, %s22
    %p31 = scmp.eq.s32.totalorder %s14, 1
    %p32 = por %p30, %p31
    %p33 = scmp.ne.s32.totalorder %s22, %s23
    %p34 = scmp.eq.s32.totalorder %s14, 0
    %p35 = por %p33, %p34
    %p36 = scmp.ne.s32.totalorder %s22, %s23
    %p37 = scmp.eq.s32.totalorder %s15, 1
    %p38 = por %p36, %p37
    %p40 = scmp.ne.s32.totalorder %s23, %s39
    %p41 = scmp.eq.s32.totalorder %s15, 0
    %p42 = por %p40, %p41
    %s44 = sadd.s32 %s43, 1
    %p47 = scmp.eq.s32.totalorder %s9, 1
    %p48 = scmp.ne.s32.totalorder %s43, %s45
    %p49 = scmp.eq.s32.totalorder %s9, 0
    %p50 = por %p48, %p49
    %p51 = scmp.ne.s32.totalorder %s43, %s45
    %p52 = scmp.eq.s32.totalorder %s14, 1
    %p53 = por %p51, %p52
    %p54 = scmp.ne.s32.totalorder %s45, %s46
    %p55 = scmp.eq.s32.totalorder %s14, 0
    %p56 = por %p54, %p55
    %p57 = scmp.ne.s32.totalorder %s45, %s46
    %p58 = scmp.eq.s32.totalorder %s15, 1
    %p59 = por %p57, %p58
    %p61 = scmp.ne.s32.totalorder %s46, %s60
    %p62 = scmp.eq.s32.totalorder %s15, 0
    %p63 = por %p61, %p62
    %s65 = sadd.s32 %s64, 1
    %p68 = scmp.eq.s32.totalorder %s9, 1
    %p69 = scmp.ne.s32.totalorder %s64, %s66
    %p70 = scmp.eq.s32.totalorder %s9, 0
    %p71 = por %p69, %p70
    %p72 = scmp.ne.s32.totalorder %s64, %s66
    %p73 = scmp.eq.s32.totalorder %s14, 1
    %p74 = por %p72, %p73
    %p75 = scmp.ne.s32.totalorder %s66, %s67
    %p76 = scmp.eq.s32.totalorder %s14, 0
    %p77 = por %p75, %p76
    %p78 = scmp.ne.s32.totalorder %s66, %s67
    %p79 = scmp.eq.s32.totalorder %s15, 1
    %p80 = por %p78, %p79
    %p82 = scmp.ne.s32.totalorder %s67, %s81
    %p83 = scmp.eq.s32.totalorder %s15, 0
    %p84 = por %p82, %p83
    %s85 = ssub.s32 %s9, %s16
    %p86 = scmp.eq.s32.totalorder %s85, 0
    %s88 = sadd.s32 %s87, 1
    %s89 = scalar_select %p86, %s87, %s88
    %p92 = pneg %p86
    %p93 = scmp.eq.s32.totalorder %s9, 1
    %p94 = por %p92, %p93
    %p95 = scmp.ne.s32.totalorder %s87, %s90
    %p96 = scmp.eq.s32.totalorder %s9, 0
    %p97 = por %p95, %p96
    %p98 = scmp.ne.s32.totalorder %s87, %s90
    %p99 = scmp.eq.s32.totalorder %s14, 1
    %p100 = por %p98, %p99
    %p101 = scmp.ne.s32.totalorder %s90, %s91
    %p102 = scmp.eq.s32.totalorder %s14, 0
    %p103 = por %p101, %p102
    %p104 = scmp.ne.s32.totalorder %s90, %s91
    %p105 = scmp.eq.s32.totalorder %s15, 1
    %p106 = por %p104, %p105
    %p108 = scmp.ne.s32.totalorder %s91, %s107
    %p109 = scmp.eq.s32.totalorder %s15, 0
    %p110 = por %p108, %p109
    %p111 = scmp.le.s32.totalorder 1, %s9
    %p112 = scmp.lt.s32.totalorder %s9, 3
    %p113 = pnand %p111, %p112
    %p114 = pneg %p113
    // Predicated region
    $region9: #{resdown_forward.5} parent=5 // pred_check
      _
    $region10: #{resdown_forward.5} parent=5 // pred_check_branch
      %116 = sbr.rel (%p113) target = $region12
    $region11: #{resdown_forward.5} parent=5 // pred_region
      %s117 = ssub.s32 %s9, 1
      // Predicated region
      $region13: #{resdown_forward.5} parent=11 // pred_check
        %p118 = pneg %p56
      $region14: #{resdown_forward.5} parent=11 // pred_check_branch
        %120 = sbr.rel (%p118) target = $region16
      $region15: #{resdown_forward.5} parent=11 // pred_region
        _
      $region16: #{resdown_forward.5} parent=11 // pred_fallthru
        _
      // Predicated region
      $region17: #{resdown_forward.5} parent=11 // pred_check
        %p121 = pneg %p77
      $region18: #{resdown_forward.5} parent=11 // pred_check_branch
        %123 = sbr.rel (%p121) target = $region20
      $region19: #{resdown_forward.5} parent=11 // pred_region
        _
      $region20: #{resdown_forward.5} parent=11 // pred_fallthru
        _
    $region12: #{resdown_forward.5} parent=5 // pred_fallthru
      _
    %p124 = scmp.lt.s32.totalorder %s9, 2
    // Predicated region
    $region21: #{resdown_forward.5} parent=5 // pred_check
      %p125 = pneg %p124
    $region22: #{resdown_forward.5} parent=5 // pred_check_branch
      %127 = sbr.rel (%p125) target = $region24
    $region23: #{resdown_forward.5} parent=5 // pred_region
      // Predicated region
      $region25: #{resdown_forward.5} parent=23 // pred_check
        %p128 = pneg %p29
      $region26: #{resdown_forward.5} parent=23 // pred_check_branch
        %130 = sbr.rel (%p128) target = $region28
      $region27: #{resdown_forward.5} parent=23 // pred_region
        %p131 = scmp.lt.s32.totalorder %s9, 1
        %s132 = scalar_select %p131, %s9, 1
        %s133 = smul.addr %s132, 4
        %s134 = smul.addr %s133, 4
        %s135 = scalar_lea.vmem %s0, %s134
      $region28: #{resdown_forward.5} parent=23 // pred_fallthru
        _
    $region24: #{resdown_forward.5} parent=5 // pred_fallthru
      _
    %p136 = scmp.le.s32.totalorder 1, %s9
    %p137 = scmp.lt.s32.totalorder %s9, 3
    %p138 = pnand %p136, %p137
    %p139 = pneg %p138
    // Predicated region
    $region29: #{resdown_forward.5} parent=5 // pred_check
      _
    $region30: #{resdown_forward.5} parent=5 // pred_check_branch
      %141 = sbr.rel (%p138) target = $region32
    $region31: #{resdown_forward.5} parent=5 // pred_region
      %s142 = ssub.s32 %s9, 1
      %p143 = scmp.lt.s32.totalorder %s14, 1
      %s144 = scalar_select %p143, %s14, 1
      %s145 = smul.addr %s144, 4
      %s146 = smul.addr %s145, 4
      %s147 = scalar_lea.vmem %s0, %s146
      %p148 = pneg %p35
      %p149 = pneg %p32
      %p150 = pneg %p56
      %p151 = pneg %p53
      %p152 = pneg %p77
      %p153 = pneg %p74
      %p154 = pneg %p103
      %p155 = pneg %p100
      %p156 = scmp.lt.s32.totalorder %s14, 1
      %s157 = scalar_select %p156, %s14, 1
      %s158 = smul.addr %s157, 4
      %s159 = smul.addr %s158, 8
      %s160 = scalar_lea.vmem %s3, %s159
      %p161 = scmp.lt.s32.totalorder %s14, 1
      %s162 = scalar_select %p161, %s14, 1
      %s163 = smul.addr %s162, 4
      %s164 = smul.addr %s163, 4
      %s165 = scalar_lea.vmem %s0, %s164
      %p166 = scmp.lt.s32.totalorder %s14, 1
      %s167 = scalar_select %p166, %s14, 1
      %s168 = smul.addr %s167, 4
      %s169 = smul.addr %s168, 8
      %s170 = scalar_lea.vmem %s3, %s169
      %v172 = vld [vmem:[%s165] sm:$0xff]
      %v173 = vld [vmem:[%s165 + $0x8] sm:$0xff]
      %v174 = vld [vmem:[%s1] sm:$0xf]
      %v175 = vld [vmem:[%s1 + $0x4] sm:$0xf]
      %v176 = vld [vmem:[%s1 + $0x8] sm:$0xf]
      %v177 = vld [vmem:[%s1 + $0xc] sm:$0xf]
      %s178 = scalar_lea.vmem %s1, 16
      %v179 = vld [vmem:[%s178] sm:$0xf]
      %v180 = vld [vmem:[%s178 + $0x4] sm:$0xf]
      %v181 = vld [vmem:[%s178 + $0x8] sm:$0xf]
      %v182 = vld [vmem:[%s178 + $0xc] sm:$0xf]
      %v187 = vunpack.c.l.b16 %v179
      %v188 = vunpack.c.l.b16 %v180
      %v189 = vunpack.c.l.b16 %v181
      %v190 = vunpack.c.l.b16 %v182
      %v191 = vpack.c.b16 %v188, %v187
      %v192 = vpack.c.b16 %v190, %v189
      %v195 = vunpack.c.l.b16 %v172
      %v196 = vunpack.c.h.b16 %v172
      %v197 = vunpack.c.l.b16 %v173
      %v198 = vunpack.c.h.b16 %v173
      %v199 = vpack.c.b16 %v197, %v195
      %v200 = vpack.c.b16 %v198, %v196
      %201 = vrot.lane.b32.xlu0 %v199, 127
      %v202 = vpop.permute.xlu0 %201
      %203 = vrot.lane.b32.xlu0 %v200, 127
      %v204 = vpop.permute.xlu0 %203
      %vm205 = vcmask 1039360
      %v206 = vsel %vm205, %v202, %v204
      %vm208 = vcmask 130048
      %v210 = vsel %vm208, %v191, 0
      %v213 = vsel %vm208, %v192, 0
      %215 = vmatprep.subr.bf16.mxu0 0
      %216 = vmatpush1.bf16.msra.mxu0 %v206
      %217 = vmatprep.subr.bf16.mxu0 0
      %218 = vmatpush1.bf16.msra.mxu0 0
      %219 = vmatprep.subr.bf16.mxu0 0
      %220 = vmatpush1.bf16.msra.mxu0 0
      %221 = vmatprep.subr.bf16.mxu0 0
      %222 = vmatpush1.bf16.msra.mxu0 0
      %223 = vmatprep.subr.bf16.mxu0 0
      %224 = vmatpush1.bf16.msra.mxu0 0
      %225 = vmatprep.subr.bf16.mxu0 0
      %226 = vmatpush1.bf16.msra.mxu0 0
      %227 = vmatprep.subr.bf16.mxu0 0
      %228 = vmatpush1.bf16.msra.mxu0 0
      %229 = vmatprep.subr.bf16.mxu0 0
      %230 = vmatpush1.bf16.msra.mxu0 0
      %231 = vmatprep.subr.bf16.mxu0 0
      %232 = vmatpush1.bf16.msra.mxu0 0
      %233 = vmatprep.subr.bf16.mxu0 0
      %234 = vmatpush1.bf16.msra.mxu0 0
      %235 = vmatprep.subr.bf16.mxu0 0
      %236 = vmatpush1.bf16.msra.mxu0 0
      %237 = vmatprep.subr.bf16.mxu0 0
      %238 = vmatpush1.bf16.msra.mxu0 0
      %239 = vmatprep.subr.bf16.mxu0 0
      %240 = vmatpush1.bf16.msra.mxu0 0
      %241 = vmatprep.subr.bf16.mxu0 0
      %242 = vmatpush1.bf16.msra.mxu0 0
      %243 = vmatprep.subr.bf16.mxu0 0
      %244 = vmatpush1.bf16.msra.mxu0 0
      %245 = vmatprep.subr.bf16.mxu0 0
      %246 = vmatpush1.bf16.msra.mxu0 0
      %247 = vmatprep.mubr.bf16.mxu0 0
      %248 = vmatmul.mubr.bf16.gmra.mrb[0].mxu0 %v210
      %v249 = vpop.f32.mrb[0].mxu0
      %v250 = vadd.f32 0.0, %v249
      %v251 = vpop.f32.mrb[0].mxu0
      %v252 = vpop.f32.mrb[0].mxu0
      %v253 = vadd.f32 0.0, %v252
      %v254 = vpop.f32.mrb[0].mxu0
      %255 = vmatprep.mubr.bf16.mxu0 0
      %256 = vmatmul.mubr.bf16.gmra.mrb[0].mxu0 %v213
      %v257 = vpop.f32.mrb[0].mxu0
      %v258 = vadd.f32 0.0, %v257
      %v259 = vpop.f32.mrb[0].mxu0
      %v260 = vpop.f32.mrb[0].mxu0
      %v261 = vadd.f32 0.0, %v260
      %v262 = vpop.f32.mrb[0].mxu0
      %263 = vdwg.mxu0
      %v268 = vunpack.c.l.b16 %v174
      %v269 = vunpack.c.l.b16 %v175
      %v270 = vunpack.c.l.b16 %v176
      %v271 = vunpack.c.l.b16 %v177
      %v272 = vpack.c.b16 %v269, %v268
      %v273 = vpack.c.b16 %v271, %v270
      %v276 = vsel %vm208, %v272, 0
      %v279 = vsel %vm208, %v273, 0
      %281 = vmatprep.subr.bf16.mxu0 0
      %282 = vmatpush1.bf16.msra.mxu0 %v199
      %283 = vmatprep.subr.bf16.mxu0 0
      %284 = vmatpush1.bf16.msra.mxu0 0
      %285 = vmatprep.subr.bf16.mxu0 0
      %286 = vmatpush1.bf16.msra.mxu0 0
      %287 = vmatprep.subr.bf16.mxu0 0
      %288 = vmatpush1.bf16.msra.mxu0 0
      %289 = vmatprep.subr.bf16.mxu0 0
      %290 = vmatpush1.bf16.msra.mxu0 0
      %291 = vmatprep.subr.bf16.mxu0 0
      %292 = vmatpush1.bf16.msra.mxu0 0
      %293 = vmatprep.subr.bf16.mxu0 0
      %294 = vmatpush1.bf16.msra.mxu0 0
      %295 = vmatprep.subr.bf16.mxu0 0
      %296 = vmatpush1.bf16.msra.mxu0 0
      %297 = vmatprep.subr.bf16.mxu0 0
      %298 = vmatpush1.bf16.msra.mxu0 0
      %299 = vmatprep.subr.bf16.mxu0 0
      %300 = vmatpush1.bf16.msra.mxu0 0
      %301 = vmatprep.subr.bf16.mxu0 0
      %302 = vmatpush1.bf16.msra.mxu0 0
      %303 = vmatprep.subr.bf16.mxu0 0
      %304 = vmatpush1.bf16.msra.mxu0 0
      %305 = vmatprep.subr.bf16.mxu0 0
      %306 = vmatpush1.bf16.msra.mxu0 0
      %307 = vmatprep.subr.bf16.mxu0 0
      %308 = vmatpush1.bf16.msra.mxu0 0
      %309 = vmatprep.subr.bf16.mxu0 0
      %310 = vmatpush1.bf16.msra.mxu0 0
      %311 = vmatprep.subr.bf16.mxu0 0
      %312 = vmatpush1.bf16.msra.mxu0 0
      %313 = vmatprep.mubr.bf16.mxu0 0
      %314 = vmatmul.mubr.bf16.gmra.mrb[0].mxu0 %v276
      %v315 = vpop.f32.mrb[0].mxu0
      %v316 = vadd.f32 %v250, %v315
      %v317 = vpop.f32.mrb[0].mxu0
      %v318 = vpop.f32.mrb[0].mxu0
      %v319 = vadd.f32 %v253, %v318
      %v320 = vpop.f32.mrb[0].mxu0
      %321 = vmatprep.mubr.bf16.mxu0 0
      %322 = vmatmul.mubr.bf16.gmra.mrb[0].mxu0 %v279
      %v323 = vpop.f32.mrb[0].mxu0
      %v324 = vadd.f32 %v258, %v323
      %v325 = vpop.f32.mrb[0].mxu0
      %v326 = vpop.f32.mrb[0].mxu0
      %v327 = vadd.f32 %v261, %v326
      %v328 = vpop.f32.mrb[0].mxu0
      %329 = vdwg.mxu0
      %s330 = scalar_lea.vmem %s1, 32
      %v331 = vld [vmem:[%s330] sm:$0xf]
      %v332 = vld [vmem:[%s330 + $0x4] sm:$0xf]
      %v333 = vld [vmem:[%s330 + $0x8] sm:$0xf]
      %v334 = vld [vmem:[%s330 + $0xc] sm:$0xf]
      %v339 = vunpack.c.l.b16 %v331
      %v340 = vunpack.c.l.b16 %v332
      %v341 = vunpack.c.l.b16 %v333
      %v342 = vunpack.c.l.b16 %v334
      %v343 = vpack.c.b16 %v340, %v339
      %v344 = vpack.c.b16 %v342, %v341
      %345 = vrot.lane.b32.xlu0 %v199, 126
      %v346 = vpop.permute.xlu0 %345
      %347 = vrot.lane.b32.xlu0 %v200, 126
      %v348 = vpop.permute.xlu0 %347
      %vm349 = vcmask 1031168
      %v350 = vsel %vm349, %v346, %v348
      %v353 = vsel %vm208, %v343, 0
      %v356 = vsel %vm208, %v344, 0
      %358 = vmatprep.subr.bf16.mxu0 0
      %359 = vmatpush1.bf16.msra.mxu0 %v350
      %360 = vmatprep.subr.bf16.mxu0 0
      %361 = vmatpush1.bf16.msra.mxu0 0
      %362 = vmatprep.subr.bf16.mxu0 0
      %363 = vmatpush1.bf16.msra.mxu0 0
      %364 = vmatprep.subr.bf16.mxu0 0
      %365 = vmatpush1.bf16.msra.mxu0 0
      %366 = vmatprep.subr.bf16.mxu0 0
      %367 = vmatpush1.bf16.msra.mxu0 0
      %368 = vmatprep.subr.bf16.mxu0 0
      %369 = vmatpush1.bf16.msra.mxu0 0
      %370 = vmatprep.subr.bf16.mxu0 0
      %371 = vmatpush1.bf16.msra.mxu0 0
      %372 = vmatprep.subr.bf16.mxu0 0
      %373 = vmatpush1.bf16.msra.mxu0 0
      %374 = vmatprep.subr.bf16.mxu0 0
      %375 = vmatpush1.bf16.msra.mxu0 0
      %376 = vmatprep.subr.bf16.mxu0 0
      %377 = vmatpush1.bf16.msra.mxu0 0
      %378 = vmatprep.subr.bf16.mxu0 0
      %379 = vmatpush1.bf16.msra.mxu0 0
      %380 = vmatprep.subr.bf16.mxu0 0
      %381 = vmatpush1.bf16.msra.mxu0 0
      %382 = vmatprep.subr.bf16.mxu0 0
      %383 = vmatpush1.bf16.msra.mxu0 0
      %384 = vmatprep.subr.bf16.mxu0 0
      %385 = vmatpush1.bf16.msra.mxu0 0
      %386 = vmatprep.subr.bf16.mxu0 0
      %387 = vmatpush1.bf16.msra.mxu0 0
      %388 = vmatprep.subr.bf16.mxu0 0
      %389 = vmatpush1.bf16.msra.mxu0 0
      %390 = vmatprep.mubr.bf16.mxu0 0
      %391 = vmatmul.mubr.bf16.gmra.mrb[0].mxu0 %v353
      %v392 = vpop.f32.mrb[0].mxu0
      %v393 = vadd.f32 0.0, %v392
      %v394 = vpop.f32.mrb[0].mxu0
      %v395 = vpop.f32.mrb[0].mxu0
      %v396 = vadd.f32 0.0, %v395
      %v397 = vpop.f32.mrb[0].mxu0
      %398 = vmatprep.mubr.bf16.mxu0 0
      %399 = vmatmul.mubr.bf16.gmra.mrb[0].mxu0 %v356
      %v400 = vpop.f32.mrb[0].mxu0
      %v401 = vadd.f32 0.0, %v400
      %v402 = vpop.f32.mrb[0].mxu0
      %v403 = vpop.f32.mrb[0].mxu0
      %v404 = vadd.f32 0.0, %v403
      %v405 = vpop.f32.mrb[0].mxu0
      %406 = vdwg.mxu0
      %v407 = vadd.f32 %v316, %v393
      %v408 = vadd.f32 %v319, %v396
      %v409 = vadd.f32 %v324, %v401
      %v410 = vadd.f32 %v327, %v404
      %s411 = scalar_lea.vmem %s1, 48
      %v412 = vld [vmem:[%s411] sm:$0xf]
      %v413 = vld [vmem:[%s411 + $0x4] sm:$0xf]
      %v414 = vld [vmem:[%s411 + $0x8] sm:$0xf]
      %v415 = vld [vmem:[%s411 + $0xc] sm:$0xf]
      %v420 = vunpack.c.l.b16 %v412
      %v421 = vunpack.c.l.b16 %v413
      %v422 = vunpack.c.l.b16 %v414
      %v423 = vunpack.c.l.b16 %v415
      %v424 = vpack.c.b16 %v421, %v420
      %v425 = vpack.c.b16 %v423, %v422
      %426 = vrot.lane.b32.xlu0 %v199, 118
      %v427 = vpop.permute.xlu0 %426
      %428 = vrot.lane.b32.xlu0 %v200, 118
      %v429 = vpop.permute.xlu0 %428
      %vm430 = vcmask 965632
      %v431 = vsel %vm430, %v427, %v429
      %v434 = vsel %vm208, %v424, 0
      %v437 = vsel %vm208, %v425, 0
      %439 = vmatprep.subr.bf16.mxu0 0
      %440 = vmatpush1.bf16.msra.mxu0 %v431
      %441 = vmatprep.subr.bf16.mxu0 0
      %442 = vmatpush1.bf16.msra.mxu0 0
      %443 = vmatprep.subr.bf16.mxu0 0
      %444 = vmatpush1.bf16.msra.mxu0 0
      %445 = vmatprep.subr.bf16.mxu0 0
      %446 = vmatpush1.bf16.msra.mxu0 0
      %447 = vmatprep.subr.bf16.mxu0 0
      %448 = vmatpush1.bf16.msra.mxu0 0
      %449 = vmatprep.subr.bf16.mxu0 0
      %450 = vmatpush1.bf16.msra.mxu0 0
      %451 = vmatprep.subr.bf16.mxu0 0
      %452 = vmatpush1.bf16.msra.mxu0 0
      %453 = vmatprep.subr.bf16.mxu0 0
      %454 = vmatpush1.bf16.msra.mxu0 0
      %455 = vmatprep.subr.bf16.mxu0 0
      %456 = vmatpush1.bf16.msra.mxu0 0
      %457 = vmatprep.subr.bf16.mxu0 0
      %458 = vmatpush1.bf16.msra.mxu0 0
      %459 = vmatprep.subr.bf16.mxu0 0
      %460 = vmatpush1.bf16.msra.mxu0 0
      %461 = vmatprep.subr.bf16.mxu0 0
      %462 = vmatpush1.bf16.msra.mxu0 0
      %463 = vmatprep.subr.bf16.mxu0 0
      %464 = vmatpush1.bf16.msra.mxu0 0
      %465 = vmatprep.subr.bf16.mxu0 0
      %466 = vmatpush1.bf16.msra.mxu0 0
      %467 = vmatprep.subr.bf16.mxu0 0
      %468 = vmatpush1.bf16.msra.mxu0 0
      %469 = vmatprep.subr.bf16.mxu0 0
      %470 = vmatpush1.bf16.msra.mxu0 0
      %471 = vmatprep.mubr.bf16.mxu0 0
      %472 = vmatmul.mubr.bf16.gmra.mrb[0].mxu0 %v434
      %v473 = vpop.f32.mrb[0].mxu0
      %v474 = vadd.f32 0.0, %v473
      %v475 = vpop.f32.mrb[0].mxu0
      %v476 = vpop.f32.mrb[0].mxu0
      %v477 = vadd.f32 0.0, %v476
      %v478 = vpop.f32.mrb[0].mxu0
      %479 = vmatprep.mubr.bf16.mxu0 0
      %480 = vmatmul.mubr.bf16.gmra.mrb[0].mxu0 %v437
      %v481 = vpop.f32.mrb[0].mxu0
      %v482 = vadd.f32 0.0, %v481
      %v483 = vpop.f32.mrb[0].mxu0
      %v484 = vpop.f32.mrb[0].mxu0
      %v485 = vadd.f32 0.0, %v484
      %v486 = vpop.f32.mrb[0].mxu0
      %487 = vdwg.mxu0
      %v488 = vadd.f32 %v407, %v474
      %v489 = vadd.f32 %v408, %v477
      %v490 = vadd.f32 %v409, %v482
      %v491 = vadd.f32 %v410, %v485
      %s492 = scalar_lea.vmem %s1, 64
      %v493 = vld [vmem:[%s492] sm:$0xf]
      %v494 = vld [vmem:[%s492 + $0x4] sm:$0xf]
      %v495 = vld [vmem:[%s492 + $0x8] sm:$0xf]
      %v496 = vld [vmem:[%s492 + $0xc] sm:$0xf]
      %v501 = vunpack.c.l.b16 %v493
      %v502 = vunpack.c.l.b16 %v494
      %v503 = vunpack.c.l.b16 %v495
      %v504 = vunpack.c.l.b16 %v496
      %v505 = vpack.c.b16 %v502, %v501
      %v506 = vpack.c.b16 %v504, %v503
      %507 = vrot.lane.b32.xlu0 %v199, 117
      %v508 = vpop.permute.xlu0 %507
      %509 = vrot.lane.b32.xlu0 %v200, 117
      %v510 = vpop.permute.xlu0 %509
      %vm511 = vcmask 957440
      %v512 = vsel %vm511, %v508, %v510
      %v515 = vsel %vm208, %v505, 0
      %v518 = vsel %vm208, %v506, 0
      %520 = vmatprep.subr.bf16.mxu0 0
      %521 = vmatpush1.bf16.msra.mxu0 %v512
      %522 = vmatprep.subr.bf16.mxu0 0
      %523 = vmatpush1.bf16.msra.mxu0 0
      %524 = vmatprep.subr.bf16.mxu0 0
      %525 = vmatpush1.bf16.msra.mxu0 0
      %526 = vmatprep.subr.bf16.mxu0 0
      %527 = vmatpush1.bf16.msra.mxu0 0
      %528 = vmatprep.subr.bf16.mxu0 0
      %529 = vmatpush1.bf16.msra.mxu0 0
      %530 = vmatprep.subr.bf16.mxu0 0
      %531 = vmatpush1.bf16.msra.mxu0 0
      %532 = vmatprep.subr.bf16.mxu0 0
      %533 = vmatpush1.bf16.msra.mxu0 0
      %534 = vmatprep.subr.bf16.mxu0 0
      %535 = vmatpush1.bf16.msra.mxu0 0
      %536 = vmatprep.subr.bf16.mxu0 0
      %537 = vmatpush1.bf16.msra.mxu0 0
      %538 = vmatprep.subr.bf16.mxu0 0
      %539 = vmatpush1.bf16.msra.mxu0 0
      %540 = vmatprep.subr.bf16.mxu0 0
      %541 = vmatpush1.bf16.msra.mxu0 0
      %542 = vmatprep.subr.bf16.mxu0 0
      %543 = vmatpush1.bf16.msra.mxu0 0
      %544 = vmatprep.subr.bf16.mxu0 0
      %545 = vmatpush1.bf16.msra.mxu0 0
      %546 = vmatprep.subr.bf16.mxu0 0
      %547 = vmatpush1.bf16.msra.mxu0 0
      %548 = vmatprep.subr.bf16.mxu0 0
      %549 = vmatpush1.bf16.msra.mxu0 0
      %550 = vmatprep.subr.bf16.mxu0 0
      %551 = vmatpush1.bf16.msra.mxu0 0
      %552 = vmatprep.mubr.bf16.mxu0 0
      %553 = vmatmul.mubr.bf16.gmra.mrb[0].mxu0 %v515
      %v554 = vpop.f32.mrb[0].mxu0
      %v555 = vadd.f32 0.0, %v554
      %v556 = vpop.f32.mrb[0].mxu0
      %v557 = vpop.f32.mrb[0].mxu0
      %v558 = vadd.f32 0.0, %v557
      %v559 = vpop.f32.mrb[0].mxu0
      %560 = vmatprep.mubr.bf16.mxu0 0
      %561 = vmatmul.mubr.bf16.gmra.mrb[0].mxu0 %v518
      %v562 = vpop.f32.mrb[0].mxu0
      %v563 = vadd.f32 0.0, %v562
      %v564 = vpop.f32.mrb[0].mxu0
      %v565 = vpop.f32.mrb[0].mxu0
      %v566 = vadd.f32 0.0, %v565
      %v567 = vpop.f32.mrb[0].mxu0
      %568 = vdwg.mxu0
      %v569 = vadd.f32 %v488, %v555
      %v570 = vadd.f32 %v489, %v558
      %v571 = vadd.f32 %v490, %v563
      %v572 = vadd.f32 %v491, %v566
      %s573 = scalar_lea.vmem %s1, 80
      %v574 = vld [vmem:[%s573] sm:$0xf]
      %v575 = vld [vmem:[%s573 + $0x4] sm:$0xf]
      %v576 = vld [vmem:[%s573 + $0x8] sm:$0xf]
      %v577 = vld [vmem:[%s573 + $0xc] sm:$0xf]
      %v582 = vunpack.c.l.b16 %v574
      %v583 = vunpack.c.l.b16 %v575
      %v584 = vunpack.c.l.b16 %v576
      %v585 = vunpack.c.l.b16 %v577
      %v586 = vpack.c.b16 %v583, %v582
      %v587 = vpack.c.b16 %v585, %v584
      %588 = vrot.lane.b32.xlu0 %v199, 116
      %v589 = vpop.permute.xlu0 %588
      %590 = vrot.lane.b32.xlu0 %v200, 116
      %v591 = vpop.permute.xlu0 %590
      %vm592 = vcmask 949248
      %v593 = vsel %vm592, %v589, %v591
      %v596 = vsel %vm208, %v586, 0
      %v599 = vsel %vm208, %v587, 0
      %601 = vmatprep.subr.bf16.mxu0 0
      %602 = vmatpush1.bf16.msra.mxu0 %v593
      %603 = vmatprep.subr.bf16.mxu0 0
      %604 = vmatpush1.bf16.msra.mxu0 0
      %605 = vmatprep.subr.bf16.mxu0 0
      %606 = vmatpush1.bf16.msra.mxu0 0
      %607 = vmatprep.subr.bf16.mxu0 0
      %608 = vmatpush1.bf16.msra.mxu0 0
      %609 = vmatprep.subr.bf16.mxu0 0
      %610 = vmatpush1.bf16.msra.mxu0 0
      %611 = vmatprep.subr.bf16.mxu0 0
      %612 = vmatpush1.bf16.msra.mxu0 0
      %613 = vmatprep.subr.bf16.mxu0 0
      %614 = vmatpush1.bf16.msra.mxu0 0
      %615 = vmatprep.subr.bf16.mxu0 0
      %616 = vmatpush1.bf16.msra.mxu0 0
      %617 = vmatprep.subr.bf16.mxu0 0
      %618 = vmatpush1.bf16.msra.mxu0 0
      %619 = vmatprep.subr.bf16.mxu0 0
      %620 = vmatpush1.bf16.msra.mxu0 0
      %621 = vmatprep.subr.bf16.mxu0 0
      %622 = vmatpush1.bf16.msra.mxu0 0
      %623 = vmatprep.subr.bf16.mxu0 0
      %624 = vmatpush1.bf16.msra.mxu0 0
      %625 = vmatprep.subr.bf16.mxu0 0
      %626 = vmatpush1.bf16.msra.mxu0 0
      %627 = vmatprep.subr.bf16.mxu0 0
      %628 = vmatpush1.bf16.msra.mxu0 0
      %629 = vmatprep.subr.bf16.mxu0 0
      %630 = vmatpush1.bf16.msra.mxu0 0
      %631 = vmatprep.subr.bf16.mxu0 0
      %632 = vmatpush1.bf16.msra.mxu0 0
      %633 = vmatprep.mubr.bf16.mxu0 0
      %634 = vmatmul.mubr.bf16.gmra.mrb[0].mxu0 %v596
      %v635 = vpop.f32.mrb[0].mxu0
      %v636 = vadd.f32 0.0, %v635
      %v637 = vpop.f32.mrb[0].mxu0
      %v638 = vpop.f32.mrb[0].mxu0
      %v639 = vadd.f32 0.0, %v638
      %v640 = vpop.f32.mrb[0].mxu0
      %641 = vmatprep.mubr.bf16.mxu0 0
      %642 = vmatmul.mubr.bf16.gmra.mrb[0].mxu0 %v599
      %v643 = vpop.f32.mrb[0].mxu0
      %v644 = vadd.f32 0.0, %v643
      %v645 = vpop.f32.mrb[0].mxu0
      %v646 = vpop.f32.mrb[0].mxu0
      %v647 = vadd.f32 0.0, %v646
      %v648 = vpop.f32.mrb[0].mxu0
      %649 = vdwg.mxu0
      %v650 = vadd.f32 %v569, %v636
      %v651 = vadd.f32 %v570, %v639
      %v652 = vadd.f32 %v571, %v644
      %v653 = vadd.f32 %v572, %v647
      %s654 = scalar_lea.vmem %s1, 96
      %v655 = vld [vmem:[%s654] sm:$0xf]
      %v656 = vld [vmem:[%s654 + $0x4] sm:$0xf]
      %v657 = vld [vmem:[%s654 + $0x8] sm:$0xf]
      %v658 = vld [vmem:[%s654 + $0xc] sm:$0xf]
      %v663 = vunpack.c.l.b16 %v655
      %v664 = vunpack.c.l.b16 %v656
      %v665 = vunpack.c.l.b16 %v657
      %v666 = vunpack.c.l.b16 %v658
      %v667 = vpack.c.b16 %v664, %v663
      %v668 = vpack.c.b16 %v666, %v665
      %669 = vrot.lane.b32.xlu0 %v199, 108
      %v670 = vpop.permute.xlu0 %669
      %671 = vrot.lane.b32.xlu0 %v200, 108
      %v672 = vpop.permute.xlu0 %671
      %vm673 = vcmask 883712
      %v674 = vsel %vm673, %v670, %v672
      %v677 = vsel %vm208, %v667, 0
      %v680 = vsel %vm208, %v668, 0
      %682 = vmatprep.subr.bf16.mxu0 0
      %683 = vmatpush1.bf16.msra.mxu0 %v674
      %684 = vmatprep.subr.bf16.mxu0 0
      %685 = vmatpush1.bf16.msra.mxu0 0
      %686 = vmatprep.subr.bf16.mxu0 0
      %687 = vmatpush1.bf16.msra.mxu0 0
      %688 = vmatprep.subr.bf16.mxu0 0
      %689 = vmatpush1.bf16.msra.mxu0 0
      %690 = vmatprep.subr.bf16.mxu0 0
      %691 = vmatpush1.bf16.msra.mxu0 0
      %692 = vmatprep.subr.bf16.mxu0 0
      %693 = vmatpush1.bf16.msra.mxu0 0
      %694 = vmatprep.subr.bf16.mxu0 0
      %695 = vmatpush1.bf16.msra.mxu0 0
      %696 = vmatprep.subr.bf16.mxu0 0
      %697 = vmatpush1.bf16.msra.mxu0 0
      %698 = vmatprep.subr.bf16.mxu0 0
      %699 = vmatpush1.bf16.msra.mxu0 0
      %700 = vmatprep.subr.bf16.mxu0 0
      %701 = vmatpush1.bf16.msra.mxu0 0
      %702 = vmatprep.subr.bf16.mxu0 0
      %703 = vmatpush1.bf16.msra.mxu0 0
      %704 = vmatprep.subr.bf16.mxu0 0
      %705 = vmatpush1.bf16.msra.mxu0 0
      %706 = vmatprep.subr.bf16.mxu0 0
      %707 = vmatpush1.bf16.msra.mxu0 0
      %708 = vmatprep.subr.bf16.mxu0 0
      %709 = vmatpush1.bf16.msra.mxu0 0
      %710 = vmatprep.subr.bf16.mxu0 0
      %711 = vmatpush1.bf16.msra.mxu0 0
      %712 = vmatprep.subr.bf16.mxu0 0
      %713 = vmatpush1.bf16.msra.mxu0 0
      %714 = vmatprep.mubr.bf16.mxu0 0
      %715 = vmatmul.mubr.bf16.gmra.mrb[0].mxu0 %v677
      %v716 = vpop.f32.mrb[0].mxu0
      %v717 = vadd.f32 0.0, %v716
      %v718 = vpop.f32.mrb[0].mxu0
      %v719 = vpop.f32.mrb[0].mxu0
      %v720 = vadd.f32 0.0, %v719
      %v721 = vpop.f32.mrb[0].mxu0
      %722 = vmatprep.mubr.bf16.mxu0 0
      %723 = vmatmul.mubr.bf16.gmra.mrb[0].mxu0 %v680
      %v724 = vpop.f32.mrb[0].mxu0
      %v725 = vadd.f32 0.0, %v724
      %v726 = vpop.f32.mrb[0].mxu0
      %v727 = vpop.f32.mrb[0].mxu0
      %v728 = vadd.f32 0.0, %v727
      %v729 = vpop.f32.mrb[0].mxu0
      %730 = vdwg.mxu0
      %v731 = vadd.f32 %v650, %v717
      %v732 = vadd.f32 %v651, %v720
      %v733 = vadd.f32 %v652, %v725
      %v734 = vadd.f32 %v653, %v728
      %s735 = scalar_lea.vmem %s1, 112
      %v736 = vld [vmem:[%s735] sm:$0xf]
      %v737 = vld [vmem:[%s735 + $0x4] sm:$0xf]
      %v738 = vld [vmem:[%s735 + $0x8] sm:$0xf]
      %v739 = vld [vmem:[%s735 + $0xc] sm:$0xf]
      %v744 = vunpack.c.l.b16 %v736
      %v745 = vunpack.c.l.b16 %v737
      %v746 = vunpack.c.l.b16 %v738
      %v747 = vunpack.c.l.b16 %v739
      %v748 = vpack.c.b16 %v745, %v744
      %v749 = vpack.c.b16 %v747, %v746
      %750 = vrot.lane.b32.xlu0 %v199, 107
      %v751 = vpop.permute.xlu0 %750
      %752 = vrot.lane.b32.xlu0 %v200, 107
      %v753 = vpop.permute.xlu0 %752
      %vm754 = vcmask 875520
      %v755 = vsel %vm754, %v751, %v753
      %v758 = vsel %vm208, %v748, 0
      %v761 = vsel %vm208, %v749, 0
      %763 = vmatprep.subr.bf16.mxu0 0
      %764 = vmatpush1.bf16.msra.mxu0 %v755
      %765 = vmatprep.subr.bf16.mxu0 0
      %766 = vmatpush1.bf16.msra.mxu0 0
      %767 = vmatprep.subr.bf16.mxu0 0
      %768 = vmatpush1.bf16.msra.mxu0 0
      %769 = vmatprep.subr.bf16.mxu0 0
      %770 = vmatpush1.bf16.msra.mxu0 0
      %771 = vmatprep.subr.bf16.mxu0 0
      %772 = vmatpush1.bf16.msra.mxu0 0
      %773 = vmatprep.subr.bf16.mxu0 0
      %774 = vmatpush1.bf16.msra.mxu0 0
      %775 = vmatprep.subr.bf16.mxu0 0
      %776 = vmatpush1.bf16.msra.mxu0 0
      %777 = vmatprep.subr.bf16.mxu0 0
      %778 = vmatpush1.bf16.msra.mxu0 0
      %779 = vmatprep.subr.bf16.mxu0 0
      %780 = vmatpush1.bf16.msra.mxu0 0
      %781 = vmatprep.subr.bf16.mxu0 0
      %782 = vmatpush1.bf16.msra.mxu0 0
      %783 = vmatprep.subr.bf16.mxu0 0
      %784 = vmatpush1.bf16.msra.mxu0 0
      %785 = vmatprep.subr.bf16.mxu0 0
      %786 = vmatpush1.bf16.msra.mxu0 0
      %787 = vmatprep.subr.bf16.mxu0 0
      %788 = vmatpush1.bf16.msra.mxu0 0
      %789 = vmatprep.subr.bf16.mxu0 0
      %790 = vmatpush1.bf16.msra.mxu0 0
      %791 = vmatprep.subr.bf16.mxu0 0
      %792 = vmatpush1.bf16.msra.mxu0 0
      %793 = vmatprep.subr.bf16.mxu0 0
      %794 = vmatpush1.bf16.msra.mxu0 0
      %795 = vmatprep.mubr.bf16.mxu0 0
      %796 = vmatmul.mubr.bf16.gmra.mrb[0].mxu0 %v758
      %v797 = vpop.f32.mrb[0].mxu0
      %v798 = vadd.f32 0.0, %v797
      %v799 = vpop.f32.mrb[0].mxu0
      %v800 = vpop.f32.mrb[0].mxu0
      %v801 = vadd.f32 0.0, %v800
      %v802 = vpop.f32.mrb[0].mxu0
      %803 = vmatprep.mubr.bf16.mxu0 0
      %804 = vmatmul.mubr.bf16.gmra.mrb[0].mxu0 %v761
      %v805 = vpop.f32.mrb[0].mxu0
      %v806 = vadd.f32 0.0, %v805
      %v807 = vpop.f32.mrb[0].mxu0
      %v808 = vpop.f32.mrb[0].mxu0
      %v809 = vadd.f32 0.0, %v808
      %v810 = vpop.f32.mrb[0].mxu0
      %811 = vdwg.mxu0
      %v812 = vadd.f32 %v731, %v798
      %v813 = vadd.f32 %v732, %v801
      %v814 = vadd.f32 %v733, %v806
      %v815 = vadd.f32 %v734, %v809
      %s816 = scalar_lea.vmem %s1, 128
      %v817 = vld [vmem:[%s816] sm:$0xf]
      %v818 = vld [vmem:[%s816 + $0x4] sm:$0xf]
      %v819 = vld [vmem:[%s816 + $0x8] sm:$0xf]
      %v820 = vld [vmem:[%s816 + $0xc] sm:$0xf]
      %v825 = vunpack.c.l.b16 %v817
      %v826 = vunpack.c.l.b16 %v818
      %v827 = vunpack.c.l.b16 %v819
      %v828 = vunpack.c.l.b16 %v820
      %v829 = vpack.c.b16 %v826, %v825
      %v830 = vpack.c.b16 %v828, %v827
      %831 = vrot.lane.b32.xlu0 %v199, 106
      %v832 = vpop.permute.xlu0 %831
      %833 = vrot.lane.b32.xlu0 %v200, 106
      %v834 = vpop.permute.xlu0 %833
      %vm835 = vcmask 867328
      %v836 = vsel %vm835, %v832, %v834
      %v839 = vsel %vm208, %v829, 0
      %v842 = vsel %vm208, %v830, 0
      %844 = vmatprep.subr.bf16.mxu0 0
      %845 = vmatpush1.bf16.msra.mxu0 %v836
      %846 = vmatprep.subr.bf16.mxu0 0
      %847 = vmatpush1.bf16.msra.mxu0 0
      %848 = vmatprep.subr.bf16.mxu0 0
      %849 = vmatpush1.bf16.msra.mxu0 0
      %850 = vmatprep.subr.bf16.mxu0 0
      %851 = vmatpush1.bf16.msra.mxu0 0
      %852 = vmatprep.subr.bf16.mxu0 0
      %853 = vmatpush1.bf16.msra.mxu0 0
      %854 = vmatprep.subr.bf16.mxu0 0
      %855 = vmatpush1.bf16.msra.mxu0 0
      %856 = vmatprep.subr.bf16.mxu0 0
      %857 = vmatpush1.bf16.msra.mxu0 0
      %858 = vmatprep.subr.bf16.mxu0 0
      %859 = vmatpush1.bf16.msra.mxu0 0
      %860 = vmatprep.subr.bf16.mxu0 0
      %861 = vmatpush1.bf16.msra.mxu0 0
      %862 = vmatprep.subr.bf16.mxu0 0
      %863 = vmatpush1.bf16.msra.mxu0 0
      %864 = vmatprep.subr.bf16.mxu0 0
      %865 = vmatpush1.bf16.msra.mxu0 0
      %866 = vmatprep.subr.bf16.mxu0 0
      %867 = vmatpush1.bf16.msra.mxu0 0
      %868 = vmatprep.subr.bf16.mxu0 0
      %869 = vmatpush1.bf16.msra.mxu0 0
      %870 = vmatprep.subr.bf16.mxu0 0
      %871 = vmatpush1.bf16.msra.mxu0 0
      %872 = vmatprep.subr.bf16.mxu0 0
      %873 = vmatpush1.bf16.msra.mxu0 0
      %874 = vmatprep.subr.bf16.mxu0 0
      %875 = vmatpush1.bf16.msra.mxu0 0
      %876 = vmatprep.mubr.bf16.mxu0 0
      %877 = vmatmul.mubr.bf16.gmra.mrb[0].mxu0 %v839
      %v878 = vpop.f32.mrb[0].mxu0
      %v879 = vadd.f32 0.0, %v878
      %v880 = vpop.f32.mrb[0].mxu0
      %v881 = vpop.f32.mrb[0].mxu0
      %v882 = vadd.f32 0.0, %v881
      %v883 = vpop.f32.mrb[0].mxu0
      %884 = vmatprep.mubr.bf16.mxu0 0
      %885 = vmatmul.mubr.bf16.gmra.mrb[0].mxu0 %v842
      %v886 = vpop.f32.mrb[0].mxu0
      %v887 = vadd.f32 0.0, %v886
      %v888 = vpop.f32.mrb[0].mxu0
      %v889 = vpop.f32.mrb[0].mxu0
      %v890 = vadd.f32 0.0, %v889
      %v891 = vpop.f32.mrb[0].mxu0
      %892 = vdwg.mxu0
      %v893 = vadd.f32 %v812, %v879
      %v894 = vadd.f32 %v813, %v882
      %v895 = vadd.f32 %v814, %v887
      %v896 = vadd.f32 %v815, %v890
      %v897 = vld [vmem:[%s2] sm:$0xff]
      %v898 = vld [vmem:[%s2 + $0x8] sm:$0xff]
      %v899 = vld [vmem:[%s2 + $0x10] sm:$0xff]
      %v900 = vld [vmem:[%s2 + $0x18] sm:$0xff]
      %902 = vset.pattern.permute.xlu0 0
      %903 = vperm.xlu0 %902, %v897
      %v904 = vpop.permute.xlu0 %903
      %907 = vset.pattern.permute.xlu0 0
      %908 = vperm.xlu0 %907, %v898
      %v909 = vpop.permute.xlu0 %908
      %912 = vset.pattern.permute.xlu0 0
      %913 = vperm.xlu0 %912, %v899
      %v914 = vpop.permute.xlu0 %913
      %917 = vset.pattern.permute.xlu0 0
      %918 = vperm.xlu0 %917, %v900
      %v919 = vpop.permute.xlu0 %918
      %v921 = vadd.f32 %v893, %v904
      %v922 = vadd.f32 %v894, %v909
      %v923 = vadd.f32 %v895, %v914
      %v924 = vadd.f32 %v896, %v919
      %925 = vst [vmem:[%s170] sm:$0xff] %v921
      %926 = vst [vmem:[%s170 + $0x8] sm:$0xff] %v922
      %927 = vst [vmem:[%s170 + $0x10] sm:$0xff] %v923
      %928 = vst [vmem:[%s170 + $0x18] sm:$0xff] %v924
      %p929 = scmp.lt.s32.totalorder %s14, 1
      %s930 = scalar_select %p929, %s14, 1
      %s931 = smul.addr %s930, 4
      %s932 = smul.addr %s931, 8
      %s933 = scalar_lea.vmem %s3, %s932
      // Predicated region
      $region33: #{resdown_forward.5} parent=31 // pred_check
        %p934 = pneg %p100
      $region34: #{resdown_forward.5} parent=31 // pred_check_branch
        %936 = sbr.rel (%p934) target = $region36
      $region35: #{resdown_forward.5} parent=31 // pred_region
        _
      $region36: #{resdown_forward.5} parent=31 // pred_fallthru
        _
    $region32: #{resdown_forward.5} parent=5 // pred_fallthru
      _
    %p937 = scmp.le.s32.totalorder 2, %s9
    // Predicated region
    $region37: #{resdown_forward.5} parent=5 // pred_check
      %p938 = pneg %p937
    $region38: #{resdown_forward.5} parent=5 // pred_check_branch
      %940 = sbr.rel (%p938) target = $region40
    $region39: #{resdown_forward.5} parent=5 // pred_region
      %s941 = ssub.s32 %s9, 2
      // Predicated region
      $region41: #{resdown_forward.5} parent=39 // pred_check
        %p942 = pneg %p106
      $region42: #{resdown_forward.5} parent=39 // pred_check_branch
        %944 = sbr.rel (%p942) target = $region44
      $region43: #{resdown_forward.5} parent=39 // pred_region
        %p945 = scmp.lt.s32.totalorder %s15, 1
        %s946 = scalar_select %p945, %s15, 1
        %s947 = smul.addr %s946, 4
        %s948 = smul.addr %s947, 8
        %s949 = scalar_lea.vmem %s3, %s948
      $region44: #{resdown_forward.5} parent=39 // pred_fallthru
        _
    $region40: #{resdown_forward.5} parent=5 // pred_fallthru
      _
  $region6: #{resdown_forward.5} parent=0 // loop_footer
    %s13 = sadd.s32 1, %s9
  $region7: #{resdown_forward.5} parent=0 // loop_footer_branch
    %8 = sbr.rel target = $region3
  $region8: #{resdown_forward.5} parent=0 // loop_exit
    _

</llo_original>
